<compile_context>
chip_gen: v7x
topology: tpu7x:2x2x1
jax: 0.10.0
libtpu: 0.0.40
codegen_flags: <defaults>
</compile_context>

<pallas_src>
import numpy as np
import jax
import jax.numpy as jnp
from jax.experimental import pallas as pl
from jax.experimental.pallas import tpu as pltpu


BN_EPS = 1e-5  # PyTorch BatchNorm1d default eps.
# TODO(synk): BatchNorm momentum=0.01 only affects running-stat buffers (not the
# training-mode forward output implemented here); running stats are not updated.


# ---------------------------------------------------------------------------
# Fused Linear + BatchNorm1d kernel (one embedding tile of width TN per grid step).
# ---------------------------------------------------------------------------
def encoder_head_kernel(x_ref, w_ref, gb_ref, o_ref):
    # In-kernel activation cast: f32 -> bf16 for the MXU fast path.
    x = x_ref[...].astype(jnp.bfloat16)                     # (B, K) bf16
    # Linear (bias omitted: it cancels under training-mode BN mean subtraction).
    z = jnp.dot(x, w_ref[...], preferred_element_type=jnp.float32)   # (B, TN) f32

    # BatchNorm1d, training-mode forward: per-feature batch mean / biased variance.
    mean = jnp.mean(z, axis=0, keepdims=True)               # (1, TN)
    centered = z - mean
    var = jnp.mean(centered * centered, axis=0, keepdims=True)
    inv_std = jax.lax.rsqrt(var + BN_EPS)                   # (1, TN)

    gamma = gb_ref[0:1, :]                                  # (1, TN)
    beta = gb_ref[1:2, :]                                   # (1, TN)
    # Folded affine: two per-element VPU ops on the (B, TN) tile.
    scale = inv_std * gamma
    shift = beta - mean * scale
    o_ref[...] = (z * scale + shift).astype(o_ref.dtype)


def _pick_tile_n(N, K, *, vmem_tile_budget=8 * 1024 * 1024):
    """Per-chip embedding tile width."""
    try:
        kind = jax.devices()[0].device_kind.lower()
    except Exception:
        kind = ""
    # v7x has 2 TensorCores per chip -> keep an even, parallel grid.
    want_steps = 2 if "v7" in kind else 1
    tn = N // want_steps
    if tn % 128 != 0 or N % tn != 0:
        tn = N
    # Shrink if the double-buffered bf16 weight tile would blow the VMEM budget
    # (relevant only for much larger K / N than resnet50's head).
    while (2 * K * tn * 2) > vmem_tile_budget and tn % 256 == 0 and N % (tn // 2) == 0:
        tn //= 2
    return tn


def encoder_head_pallas(x_f32, w_bf16, bn_affine, *, tn=None):
    """x: (B, K) f32, w: (K, N) bf16, bn_affine: (2, N) f32 [gamma; beta] -> (B, N) f32."""
    B, K = x_f32.shape
    Kw, N = w_bf16.shape
    assert K == Kw
    assert B >= 2, "training-mode BatchNorm1d needs batch size >= 2"
    assert K % 128 == 0, "infeature must be lane-aligned (resnet50: 2048)"
    assert N % 128 == 0, "embedding_size must be lane-aligned"
    if tn is None:
        tn = _pick_tile_n(N, K)
    assert N % tn == 0 and tn % 128 == 0

    grid = (N // tn,)
    return pl.pallas_call(
        encoder_head_kernel,
        out_shape=jax.ShapeDtypeStruct((B, N), jnp.float32),
        grid_spec=pltpu.PrefetchScalarGridSpec(
            num_scalar_prefetch=0,
            grid=grid,
            in_specs=[
                pl.BlockSpec((B, K), lambda j: (0, 0)),    # activations: whole batch
                pl.BlockSpec((K, tn), lambda j: (0, j)),   # bf16 weight tile (lane-dense)
                pl.BlockSpec((2, tn), lambda j: (0, j)),   # stacked [gamma; beta] tile
            ],
            out_specs=pl.BlockSpec((B, tn), lambda j: (0, j)),
        ),
        compiler_params=pltpu.CompilerParams(
            dimension_semantics=("parallel",)),            # tiles independent -> megacore on v7x
    )(x_f32, w_bf16, bn_affine)


# ---------------------------------------------------------------------------
# Full EncoderCNN.forward (post-backbone part).
# ---------------------------------------------------------------------------
def encoder_cnn_forward(params, backbone_features):
    """backbone_features: (B, infeature, 1, 1) f32 -- output of the frozen resnet."""
    B = backbone_features.shape[0]
    feats = backbone_features.reshape(B, -1)                # features.reshape(B, -1)
    return encoder_head_pallas(feats, params["linear_w"], params["bn_affine"])


# ---------------------------------------------------------------------------
# Pure-JAX reference (same bf16 matmul operands, f32 math, WITH the linear bias
# to demonstrate it cancels under training-mode BN).
# ---------------------------------------------------------------------------
def encoder_cnn_forward_ref(params, backbone_features):
    B = backbone_features.shape[0]
    feats = backbone_features.reshape(B, -1)
    x = feats.astype(jnp.bfloat16).astype(jnp.float32)
    w = params["linear_w"].astype(jnp.float32)              # stored bf16 -> upcast
    z = x @ w + params["linear_b"]                          # bias kept here on purpose
    mean = jnp.mean(z, axis=0, keepdims=True)
    var = jnp.mean((z - mean) ** 2, axis=0, keepdims=True)
    gamma = params["bn_affine"][0:1]
    beta = params["bn_affine"][1:2]
    return (z - mean) / jnp.sqrt(var + BN_EPS) * gamma + beta


# ---------------------------------------------------------------------------
# Deterministic parameters (mirrors nn.Linear / nn.BatchNorm1d shapes & init).
# ---------------------------------------------------------------------------
def init_params(key, infeature, embedding_size):
    k1, k2, k3, k4 = jax.random.split(key, 4)
    bound = 1.0 / np.sqrt(infeature)
    w = jax.random.uniform(k1, (embedding_size, infeature), jnp.float32, -bound, bound)
    b = jax.random.uniform(k2, (embedding_size,), jnp.float32, -bound, bound)
    # PyTorch BatchNorm1d initializes gamma=1, beta=0; perturb so the affine path is exercised.
    gamma = 1.0 + 0.1 * jax.random.normal(k3, (embedding_size,), jnp.float32)
    beta = 0.1 * jax.random.normal(k4, (embedding_size,), jnp.float32)
    return {
        "linear_w": w.T.astype(jnp.bfloat16),        # frozen weight: pre-cast ONCE to bf16
        "linear_b": b[None, :],                      # kept only for the reference check
        "bn_affine": jnp.stack([gamma, beta], 0),    # (2, embedding) single operand
    }


if __name__ == "__main__":
    infeature = 2048        # resnet50 fc.in_features
    embedding_size = 256    # lane-aligned (2 x 128) embedding
    B = 8                   # sublane-aligned batch

    key = jax.random.PRNGKey(0)
    kp, kf = jax.random.split(key)
    params = init_params(kp, infeature, embedding_size)

    # TODO(synk): the frozen pretrained torchvision resnet50 backbone (torch.no_grad)
    # has no self-contained Pallas equivalent here; its pooled (B, 2048, 1, 1) output
    # is synthesized directly as the kernel input.
    backbone_features = jax.random.normal(kf, (B, infeature, 1, 1), jnp.float32)

    out = encoder_cnn_forward(params, backbone_features)
    out = jax.block_until_ready(out)

    ref = jax.block_until_ready(encoder_cnn_forward_ref(params, backbone_features))

    assert out.shape == (B, embedding_size), out.shape
    np.testing.assert_allclose(np.asarray(out), np.asarray(ref), rtol=1e-2, atol=1e-2)

    print("KERNEL_OK")
</pallas_src>

<mosaic_0001>
module attributes {stable_mosaic.version = 11 : i64} {
  func.func @encoder_head_kernel(%arg0: i32, %arg1: memref<8x2048xf32, #tpu.memory_space<vmem>>, %arg2: memref<2048x256xbf16, #tpu.memory_space<vmem>>, %arg3: memref<2x256xf32, #tpu.memory_space<vmem>>, %arg4: memref<8x256xf32, #tpu.memory_space<vmem>>) attributes {dimension_semantics = [#tpu.dimension_semantics<parallel>], iteration_bounds = array<i64: 1>, scalar_prefetch = 0 : i64, scratch_operands = 0 : i64, tpu.core_type = #tpu.core_type<tc>, window_params = [{pipeline_mode = #tpu.pipeline_mode<synchronous>, transform_indices = @transform_0, window_bounds = array<i64: 8, 2048>}, {transform_indices = @transform_1, window_bounds = array<i64: 2048, 256>}, {transform_indices = @transform_2, window_bounds = array<i64: 2, 256>}, {transform_indices = @transform_3, window_bounds = array<i64: 8, 256>}]} {
    %c0 = arith.constant 0 : index
    %c0_0 = arith.constant 0 : index
    %0 = vector.load %arg1[%c0, %c0_0] : memref<8x2048xf32, #tpu.memory_space<vmem>>, vector<8x2048xf32>
    %1 = arith.truncf %0 : vector<8x2048xf32> to vector<8x2048xbf16>
    %c0_1 = arith.constant 0 : index
    %c0_2 = arith.constant 0 : index
    %2 = vector.load %arg2[%c0_1, %c0_2] : memref<2048x256xbf16, #tpu.memory_space<vmem>>, vector<2048x256xbf16>
    %cst = arith.constant dense<0.000000e+00> : vector<8x256xf32>
    %3 = tpu.matmul %1, %2, %cst {dimension_numbers = #tpu.dot_dimension_numbers<[1], [0], [0], [1], [0, 0, 1, 1], [], []>} : vector<8x2048xbf16>, vector<2048x256xbf16>, vector<8x256xf32> -> vector<8x256xf32>
    %cst_3 = arith.constant dense<0.000000e+00> : vector<256xf32>
    %4 = vector.multi_reduction <add>, %3, %cst_3 [0] : vector<8x256xf32> to vector<256xf32>
    %5 = vector.shape_cast %4 : vector<256xf32> to vector<1x256xf32>
    %cst_4 = arith.constant 8.000000e+00 : f32
    %6 = vector.broadcast %cst_4 : f32 to vector<1x256xf32>
    %7 = arith.divf %5, %6 : vector<1x256xf32>
    %8 = vector.broadcast %7 : vector<1x256xf32> to vector<8x256xf32>
    %9 = arith.subf %3, %8 : vector<8x256xf32>
    %10 = arith.mulf %9, %9 : vector<8x256xf32>
    %cst_5 = arith.constant dense<0.000000e+00> : vector<256xf32>
    %11 = vector.multi_reduction <add>, %10, %cst_5 [0] : vector<8x256xf32> to vector<256xf32>
    %12 = vector.shape_cast %11 : vector<256xf32> to vector<1x256xf32>
    %cst_6 = arith.constant 8.000000e+00 : f32
    %13 = vector.broadcast %cst_6 : f32 to vector<1x256xf32>
    %14 = arith.divf %12, %13 : vector<1x256xf32>
    %cst_7 = arith.constant 9.99999974E-6 : f32
    %15 = vector.broadcast %cst_7 : f32 to vector<1x256xf32>
    %16 = arith.addf %14, %15 : vector<1x256xf32>
    %17 = math.rsqrt %16 : vector<1x256xf32>
    %c0_8 = arith.constant 0 : index
    %c0_9 = arith.constant 0 : index
    %18 = vector.load %arg3[%c0_8, %c0_9] : memref<2x256xf32, #tpu.memory_space<vmem>>, vector<1x256xf32>
    %c1 = arith.constant 1 : index
    %c0_10 = arith.constant 0 : index
    %19 = vector.load %arg3[%c1, %c0_10] : memref<2x256xf32, #tpu.memory_space<vmem>>, vector<1x256xf32>
    %20 = arith.mulf %17, %18 : vector<1x256xf32>
    %21 = arith.mulf %7, %20 : vector<1x256xf32>
    %22 = arith.subf %19, %21 : vector<1x256xf32>
    %23 = vector.broadcast %20 : vector<1x256xf32> to vector<8x256xf32>
    %24 = arith.mulf %3, %23 : vector<8x256xf32>
    %25 = vector.broadcast %22 : vector<1x256xf32> to vector<8x256xf32>
    %26 = arith.addf %24, %25 : vector<8x256xf32>
    %c0_11 = arith.constant 0 : index
    %c0_12 = arith.constant 0 : index
    %27 = vector.load %arg4[%c0_11, %c0_12] : memref<8x256xf32, #tpu.memory_space<vmem>>, vector<8x256xf32>
    tpu.vector_store %arg4[%c0_11, %c0_12], %26 {strides = array<i32>} : memref<8x256xf32, #tpu.memory_space<vmem>>, vector<8x256xf32>,
    return
  }
  func.func @transform_0(%arg0: i32) -> (i32, i32) {
    %c0_i32 = arith.constant 0 : i32
    %c0_i32_0 = arith.constant 0 : i32
    %c0_i32_1 = arith.constant 0 : i32
    return %c0_i32, %c0_i32_0 : i32, i32
  }
  func.func @transform_1(%arg0: i32) -> (i32, i32) {
    %c0_i32 = arith.constant 0 : i32
    %c0_i32_0 = arith.constant 0 : i32
    return %c0_i32, %arg0 : i32, i32
  }
  func.func @transform_2(%arg0: i32) -> (i32, i32) {
    %c0_i32 = arith.constant 0 : i32
    %c0_i32_0 = arith.constant 0 : i32
    return %c0_i32, %arg0 : i32, i32
  }
  func.func @transform_3(%arg0: i32) -> (i32, i32) {
    %c0_i32 = arith.constant 0 : i32
    %c0_i32_0 = arith.constant 0 : i32
    return %c0_i32, %arg0 : i32, i32
  }
}

</mosaic_0001>

<llo_original>
// kernel: tpu_custom_call.1
$region0: #{tpu_custom_call.1}
  #allocation0 [shape = 'u32[]', space=smem, size = 0x4, offset = 0x4, fixed_abs, tag = 'smem constant byte address 0x4 - core index']
  #allocation1 [shape = 'u32[144,128]{1,0:T(1,128)}', space=vmem, size = 0x12000, scoped, tag = 'internal scratch']
  %s0 = inlined_call_operand.hbm [shape: f32[8,2048], index: 0, kind: input, shape index: {}]
  %s1 = inlined_call_operand.hbm [shape: bf16[2048,256], index: 1, kind: input, shape index: {}]
  %s2 = inlined_call_operand.vmem [shape: f32[2,256], index: 2, kind: input, shape index: {}]
  %s3 = inlined_call_operand.hbm [shape: f32[8,256], index: 3, kind: output, shape index: {}]
  %s4 = sld [smem:[#allocation0]]
  $region30: #{tpu_custom_call.1} parent=0
    _
  %s6 = ssub.s32 1, %s4
  %s7 = scalar_select 0, %s6, %s4
  $region1: #{tpu_custom_call.1} parent=0
    #allocation2 [shape = 'u8[65536]{0}', space=vmem, size = 0x10000, scoped, tag = 'input window, operand 0, single buffered']
    #allocation3 [shape = 's32[1]{0}', space=sflag, size = 0x4, scoped, tag = 'scoped memory for tpu_custom_call.1']
    #allocation4 [shape = 's32[1]{0}', space=sflag, size = 0x4, scoped, tag = 'scoped memory for tpu_custom_call.1']
    #allocation5 [shape = 'u8[1048576]{0}', space=vmem, size = 0x100000, scoped, tag = 'input window, operand 1, single buffered']
    #allocation6 [shape = 's32[1]{0}', space=sflag, size = 0x4, scoped, tag = 'scoped memory for tpu_custom_call.1']
    #allocation7 [shape = 'u8[8192]{0}', space=vmem, size = 0x2000, scoped, tag = 'output window, operand 0, single buffered']
    %8 = vsyncpa [#allocation3], 0
    %9 = vsyncpa [#allocation6], 0
    %10 = vsyncpa [#allocation4], 0
    // Predicated region
    $region2: #{tpu_custom_call.1} parent=1 // pred_check
      _
    $region3: #{tpu_custom_call.1} parent=1 // pred_check_branch
      %12 = sbr.rel (0) target = $region5
    $region4: #{tpu_custom_call.1} parent=1 // pred_region
      %s14 = ssub.s32 2048, 2048
      %15 = vsyncadd [#allocation3], %s14
      %s17 = sshll.u32 [#allocation2], 4
      %s18 = int_to_ptr.vmem [resolvable:$true] %s17
      %20 = dma.hbm_to_vmem [thread:$0]  %s0, 2048, %s18, [#allocation3]
    $region5: #{tpu_custom_call.1} parent=1 // pred_fallthru
      _
    // Predicated region
    $region6: #{tpu_custom_call.1} parent=1 // pred_check
      _
    $region7: #{tpu_custom_call.1} parent=1 // pred_check_branch
      %22 = sbr.rel (0) target = $region9
    $region8: #{tpu_custom_call.1} parent=1 // pred_region
      %s24 = ssub.s32 32768, 32768
      %25 = vsyncadd [#allocation6], %s24
      %s26 = sshll.u32 [#allocation5], 4
      %s27 = int_to_ptr.vmem [resolvable:$true] %s26
      %32 = dma.hbm_to_vmem [thread:$0]  %s1, 32768, %s27, [#allocation6], 128, 128, 8
    $region9: #{tpu_custom_call.1} parent=1 // pred_fallthru
      _
    // Predicated region
    $region10: #{tpu_custom_call.1} parent=1 // pred_check
      _
    $region11: #{tpu_custom_call.1} parent=1 // pred_check_branch
      %34 = sbr.rel (0) target = $region13
    $region12: #{tpu_custom_call.1} parent=1 // pred_region
      _
    $region13: #{tpu_custom_call.1} parent=1 // pred_fallthru
      _
    // Predicated region
    $region14: #{tpu_custom_call.1} parent=1 // pred_check
      _
    $region15: #{tpu_custom_call.1} parent=1 // pred_check_branch
      %36 = sbr.rel (0) target = $region17
    $region16: #{tpu_custom_call.1} parent=1 // pred_region
      %37 = dma.done [#allocation3], 2048
    $region17: #{tpu_custom_call.1} parent=1 // pred_fallthru
      _
    // Predicated region
    $region18: #{tpu_custom_call.1} parent=1 // pred_check
      _
    $region19: #{tpu_custom_call.1} parent=1 // pred_check_branch
      %39 = sbr.rel (0) target = $region21
    $region20: #{tpu_custom_call.1} parent=1 // pred_region
      %40 = dma.done [#allocation6], 32768
    $region21: #{tpu_custom_call.1} parent=1 // pred_fallthru
      _
    %v41 = vld [vmem:[#allocation2] sm:$0xff]
    %v42 = vld [vmem:[#allocation2 + $0x8] sm:$0xff]
    %v43 = vld [vmem:[#allocation2 + $0x10] sm:$0xff]
    %v44 = vld [vmem:[#allocation2 + $0x18] sm:$0xff]
    %v45 = vld [vmem:[#allocation2 + $0x20] sm:$0xff]
    %v46 = vld [vmem:[#allocation2 + $0x28] sm:$0xff]
    %v47 = vld [vmem:[#allocation2 + $0x30] sm:$0xff]
    %v48 = vld [vmem:[#allocation2 + $0x38] sm:$0xff]
    %v49 = vld [vmem:[#allocation2 + $0x40] sm:$0xff]
    %v50 = vld [vmem:[#allocation2 + $0x48] sm:$0xff]
    %v51 = vld [vmem:[#allocation2 + $0x50] sm:$0xff]
    %v52 = vld [vmem:[#allocation2 + $0x58] sm:$0xff]
    %v53 = vld [vmem:[#allocation2 + $0x60] sm:$0xff]
    %v54 = vld [vmem:[#allocation2 + $0x68] sm:$0xff]
    %v55 = vld [vmem:[#allocation2 + $0x70] sm:$0xff]
    %v56 = vld [vmem:[#allocation2 + $0x78] sm:$0xff]
    %v57 = vpack.c.bf16 %v41, %v41
    %v58 = vpack.c.bf16 %v42, %v42
    %v59 = vpack.c.bf16 %v43, %v43
    %v60 = vpack.c.bf16 %v44, %v44
    %v61 = vpack.c.bf16 %v45, %v45
    %v62 = vpack.c.bf16 %v46, %v46
    %v63 = vpack.c.bf16 %v47, %v47
    %v64 = vpack.c.bf16 %v48, %v48
    %v65 = vpack.c.bf16 %v49, %v49
    %v66 = vpack.c.bf16 %v50, %v50
    %v67 = vpack.c.bf16 %v51, %v51
    %v68 = vpack.c.bf16 %v52, %v52
    %v69 = vpack.c.bf16 %v53, %v53
    %v70 = vpack.c.bf16 %v54, %v54
    %v71 = vpack.c.bf16 %v55, %v55
    %v72 = vpack.c.bf16 %v56, %v56
    %v73 = vld [vmem:[#allocation5] sm:$0xff]
    %v74 = vld [vmem:[#allocation5 + $0x8] sm:$0xff]
    %v75 = vld [vmem:[#allocation5 + $0x10] sm:$0xff]
    %v76 = vld [vmem:[#allocation5 + $0x18] sm:$0xff]
    %v77 = vld [vmem:[#allocation5 + $0x20] sm:$0xff]
    %v78 = vld [vmem:[#allocation5 + $0x28] sm:$0xff]
    %v79 = vld [vmem:[#allocation5 + $0x30] sm:$0xff]
    %v80 = vld [vmem:[#allocation5 + $0x38] sm:$0xff]
    %v81 = vld [vmem:[#allocation5 + $0x40] sm:$0xff]
    %v82 = vld [vmem:[#allocation5 + $0x48] sm:$0xff]
    %v83 = vld [vmem:[#allocation5 + $0x50] sm:$0xff]
    %v84 = vld [vmem:[#allocation5 + $0x58] sm:$0xff]
    %v85 = vld [vmem:[#allocation5 + $0x60] sm:$0xff]
    %v86 = vld [vmem:[#allocation5 + $0x68] sm:$0xff]
    %v87 = vld [vmem:[#allocation5 + $0x70] sm:$0xff]
    %v88 = vld [vmem:[#allocation5 + $0x78] sm:$0xff]
    %v89 = vld [vmem:[#allocation5 + $0x80] sm:$0xff]
    %v90 = vld [vmem:[#allocation5 + $0x88] sm:$0xff]
    %v91 = vld [vmem:[#allocation5 + $0x90] sm:$0xff]
    %v92 = vld [vmem:[#allocation5 + $0x98] sm:$0xff]
    %v93 = vld [vmem:[#allocation5 + $0xa0] sm:$0xff]
    %v94 = vld [vmem:[#allocation5 + $0xa8] sm:$0xff]
    %v95 = vld [vmem:[#allocation5 + $0xb0] sm:$0xff]
    %v96 = vld [vmem:[#allocation5 + $0xb8] sm:$0xff]
    %v97 = vld [vmem:[#allocation5 + $0xc0] sm:$0xff]
    %v98 = vld [vmem:[#allocation5 + $0xc8] sm:$0xff]
    %v99 = vld [vmem:[#allocation5 + $0xd0] sm:$0xff]
    %v100 = vld [vmem:[#allocation5 + $0xd8] sm:$0xff]
    %v101 = vld [vmem:[#allocation5 + $0xe0] sm:$0xff]
    %v102 = vld [vmem:[#allocation5 + $0xe8] sm:$0xff]
    %v103 = vld [vmem:[#allocation5 + $0xf0] sm:$0xff]
    %v104 = vld [vmem:[#allocation5 + $0xf8] sm:$0xff]
    %v105 = vld [vmem:[#allocation5 + $0x100] sm:$0xff]
    %v106 = vld [vmem:[#allocation5 + $0x108] sm:$0xff]
    %v107 = vld [vmem:[#allocation5 + $0x110] sm:$0xff]
    %v108 = vld [vmem:[#allocation5 + $0x118] sm:$0xff]
    %v109 = vld [vmem:[#allocation5 + $0x120] sm:$0xff]
    %v110 = vld [vmem:[#allocation5 + $0x128] sm:$0xff]
    %v111 = vld [vmem:[#allocation5 + $0x130] sm:$0xff]
    %v112 = vld [vmem:[#allocation5 + $0x138] sm:$0xff]
    %v113 = vld [vmem:[#allocation5 + $0x140] sm:$0xff]
    %v114 = vld [vmem:[#allocation5 + $0x148] sm:$0xff]
    %v115 = vld [vmem:[#allocation5 + $0x150] sm:$0xff]
    %v116 = vld [vmem:[#allocation5 + $0x158] sm:$0xff]
    %v117 = vld [vmem:[#allocation5 + $0x160] sm:$0xff]
    %v118 = vld [vmem:[#allocation5 + $0x168] sm:$0xff]
    %v119 = vld [vmem:[#allocation5 + $0x170] sm:$0xff]
    %v120 = vld [vmem:[#allocation5 + $0x178] sm:$0xff]
    %v121 = vld [vmem:[#allocation5 + $0x180] sm:$0xff]
    %v122 = vld [vmem:[#allocation5 + $0x188] sm:$0xff]
    %v123 = vld [vmem:[#allocation5 + $0x190] sm:$0xff]
    %v124 = vld [vmem:[#allocation5 + $0x198] sm:$0xff]
    %v125 = vld [vmem:[#allocation5 + $0x1a0] sm:$0xff]
    %v126 = vld [vmem:[#allocation5 + $0x1a8] sm:$0xff]
    %v127 = vld [vmem:[#allocation5 + $0x1b0] sm:$0xff]
    %v128 = vld [vmem:[#allocation5 + $0x1b8] sm:$0xff]
    %v129 = vld [vmem:[#allocation5 + $0x1c0] sm:$0xff]
    %v130 = vld [vmem:[#allocation5 + $0x1c8] sm:$0xff]
    %v131 = vld [vmem:[#allocation5 + $0x1d0] sm:$0xff]
    %v132 = vld [vmem:[#allocation5 + $0x1d8] sm:$0xff]
    %v133 = vld [vmem:[#allocation5 + $0x1e0] sm:$0xff]
    %v134 = vld [vmem:[#allocation5 + $0x1e8] sm:$0xff]
    %v135 = vld [vmem:[#allocation5 + $0x1f0] sm:$0xff]
    %v136 = vld [vmem:[#allocation5 + $0x1f8] sm:$0xff]
    %v137 = vld [vmem:[#allocation5 + $0x200] sm:$0xff]
    %v138 = vld [vmem:[#allocation5 + $0x208] sm:$0xff]
    %v139 = vld [vmem:[#allocation5 + $0x210] sm:$0xff]
    %v140 = vld [vmem:[#allocation5 + $0x218] sm:$0xff]
    %v141 = vld [vmem:[#allocation5 + $0x220] sm:$0xff]
    %v142 = vld [vmem:[#allocation5 + $0x228] sm:$0xff]
    %v143 = vld [vmem:[#allocation5 + $0x230] sm:$0xff]
    %v144 = vld [vmem:[#allocation5 + $0x238] sm:$0xff]
    %v145 = vld [vmem:[#allocation5 + $0x240] sm:$0xff]
    %v146 = vld [vmem:[#allocation5 + $0x248] sm:$0xff]
    %v147 = vld [vmem:[#allocation5 + $0x250] sm:$0xff]
    %v148 = vld [vmem:[#allocation5 + $0x258] sm:$0xff]
    %v149 = vld [vmem:[#allocation5 + $0x260] sm:$0xff]
    %v150 = vld [vmem:[#allocation5 + $0x268] sm:$0xff]
    %v151 = vld [vmem:[#allocation5 + $0x270] sm:$0xff]
    %v152 = vld [vmem:[#allocation5 + $0x278] sm:$0xff]
    %v153 = vld [vmem:[#allocation5 + $0x280] sm:$0xff]
    %v154 = vld [vmem:[#allocation5 + $0x288] sm:$0xff]
    %v155 = vld [vmem:[#allocation5 + $0x290] sm:$0xff]
    %v156 = vld [vmem:[#allocation5 + $0x298] sm:$0xff]
    %v157 = vld [vmem:[#allocation5 + $0x2a0] sm:$0xff]
    %v158 = vld [vmem:[#allocation5 + $0x2a8] sm:$0xff]
    %v159 = vld [vmem:[#allocation5 + $0x2b0] sm:$0xff]
    %v160 = vld [vmem:[#allocation5 + $0x2b8] sm:$0xff]
    %v161 = vld [vmem:[#allocation5 + $0x2c0] sm:$0xff]
    %v162 = vld [vmem:[#allocation5 + $0x2c8] sm:$0xff]
    %v163 = vld [vmem:[#allocation5 + $0x2d0] sm:$0xff]
    %v164 = vld [vmem:[#allocation5 + $0x2d8] sm:$0xff]
    %v165 = vld [vmem:[#allocation5 + $0x2e0] sm:$0xff]
    %v166 = vld [vmem:[#allocation5 + $0x2e8] sm:$0xff]
    %v167 = vld [vmem:[#allocation5 + $0x2f0] sm:$0xff]
    %v168 = vld [vmem:[#allocation5 + $0x2f8] sm:$0xff]
    %v169 = vld [vmem:[#allocation5 + $0x300] sm:$0xff]
    %v170 = vld [vmem:[#allocation5 + $0x308] sm:$0xff]
    %v171 = vld [vmem:[#allocation5 + $0x310] sm:$0xff]
    %v172 = vld [vmem:[#allocation5 + $0x318] sm:$0xff]
    %v173 = vld [vmem:[#allocation5 + $0x320] sm:$0xff]
    %v174 = vld [vmem:[#allocation5 + $0x328] sm:$0xff]
    %v175 = vld [vmem:[#allocation5 + $0x330] sm:$0xff]
    %v176 = vld [vmem:[#allocation5 + $0x338] sm:$0xff]
    %v177 = vld [vmem:[#allocation5 + $0x340] sm:$0xff]
    %v178 = vld [vmem:[#allocation5 + $0x348] sm:$0xff]
    %v179 = vld [vmem:[#allocation5 + $0x350] sm:$0xff]
    %v180 = vld [vmem:[#allocation5 + $0x358] sm:$0xff]
    %v181 = vld [vmem:[#allocation5 + $0x360] sm:$0xff]
    %v182 = vld [vmem:[#allocation5 + $0x368] sm:$0xff]
    %v183 = vld [vmem:[#allocation5 + $0x370] sm:$0xff]
    %v184 = vld [vmem:[#allocation5 + $0x378] sm:$0xff]
    %v185 = vld [vmem:[#allocation5 + $0x380] sm:$0xff]
    %v186 = vld [vmem:[#allocation5 + $0x388] sm:$0xff]
    %v187 = vld [vmem:[#allocation5 + $0x390] sm:$0xff]
    %v188 = vld [vmem:[#allocation5 + $0x398] sm:$0xff]
    %v189 = vld [vmem:[#allocation5 + $0x3a0] sm:$0xff]
    %v190 = vld [vmem:[#allocation5 + $0x3a8] sm:$0xff]
    %v191 = vld [vmem:[#allocation5 + $0x3b0] sm:$0xff]
    %v192 = vld [vmem:[#allocation5 + $0x3b8] sm:$0xff]
    %v193 = vld [vmem:[#allocation5 + $0x3c0] sm:$0xff]
    %v194 = vld [vmem:[#allocation5 + $0x3c8] sm:$0xff]
    %v195 = vld [vmem:[#allocation5 + $0x3d0] sm:$0xff]
    %v196 = vld [vmem:[#allocation5 + $0x3d8] sm:$0xff]
    %v197 = vld [vmem:[#allocation5 + $0x3e0] sm:$0xff]
    %v198 = vld [vmem:[#allocation5 + $0x3e8] sm:$0xff]
    %v199 = vld [vmem:[#allocation5 + $0x3f0] sm:$0xff]
    %v200 = vld [vmem:[#allocation5 + $0x3f8] sm:$0xff]
    %v201 = vld [vmem:[#allocation5 + $0x400] sm:$0xff]
    %v202 = vld [vmem:[#allocation5 + $0x408] sm:$0xff]
    %v203 = vld [vmem:[#allocation5 + $0x410] sm:$0xff]
    %v204 = vld [vmem:[#allocation5 + $0x418] sm:$0xff]
    %v205 = vld [vmem:[#allocation5 + $0x420] sm:$0xff]
    %v206 = vld [vmem:[#allocation5 + $0x428] sm:$0xff]
    %v207 = vld [vmem:[#allocation5 + $0x430] sm:$0xff]
    %v208 = vld [vmem:[#allocation5 + $0x438] sm:$0xff]
    %v209 = vld [vmem:[#allocation5 + $0x440] sm:$0xff]
    %v210 = vld [vmem:[#allocation5 + $0x448] sm:$0xff]
    %v211 = vld [vmem:[#allocation5 + $0x450] sm:$0xff]
    %v212 = vld [vmem:[#allocation5 + $0x458] sm:$0xff]
    %v213 = vld [vmem:[#allocation5 + $0x460] sm:$0xff]
    %v214 = vld [vmem:[#allocation5 + $0x468] sm:$0xff]
    %v215 = vld [vmem:[#allocation5 + $0x470] sm:$0xff]
    %v216 = vld [vmem:[#allocation5 + $0x478] sm:$0xff]
    %v217 = vld [vmem:[#allocation5 + $0x480] sm:$0xff]
    %v218 = vld [vmem:[#allocation5 + $0x488] sm:$0xff]
    %v219 = vld [vmem:[#allocation5 + $0x490] sm:$0xff]
    %v220 = vld [vmem:[#allocation5 + $0x498] sm:$0xff]
    %v221 = vld [vmem:[#allocation5 + $0x4a0] sm:$0xff]
    %v222 = vld [vmem:[#allocation5 + $0x4a8] sm:$0xff]
    %v223 = vld [vmem:[#allocation5 + $0x4b0] sm:$0xff]
    %v224 = vld [vmem:[#allocation5 + $0x4b8] sm:$0xff]
    %v225 = vld [vmem:[#allocation5 + $0x4c0] sm:$0xff]
    %v226 = vld [vmem:[#allocation5 + $0x4c8] sm:$0xff]
    %v227 = vld [vmem:[#allocation5 + $0x4d0] sm:$0xff]
    %v228 = vld [vmem:[#allocation5 + $0x4d8] sm:$0xff]
    %v229 = vld [vmem:[#allocation5 + $0x4e0] sm:$0xff]
    %v230 = vld [vmem:[#allocation5 + $0x4e8] sm:$0xff]
    %v231 = vld [vmem:[#allocation5 + $0x4f0] sm:$0xff]
    %v232 = vld [vmem:[#allocation5 + $0x4f8] sm:$0xff]
    %v233 = vld [vmem:[#allocation5 + $0x500] sm:$0xff]
    %v234 = vld [vmem:[#allocation5 + $0x508] sm:$0xff]
    %v235 = vld [vmem:[#allocation5 + $0x510] sm:$0xff]
    %v236 = vld [vmem:[#allocation5 + $0x518] sm:$0xff]
    %v237 = vld [vmem:[#allocation5 + $0x520] sm:$0xff]
    %v238 = vld [vmem:[#allocation5 + $0x528] sm:$0xff]
    %v239 = vld [vmem:[#allocation5 + $0x530] sm:$0xff]
    %v240 = vld [vmem:[#allocation5 + $0x538] sm:$0xff]
    %v241 = vld [vmem:[#allocation5 + $0x540] sm:$0xff]
    %v242 = vld [vmem:[#allocation5 + $0x548] sm:$0xff]
    %v243 = vld [vmem:[#allocation5 + $0x550] sm:$0xff]
    %v244 = vld [vmem:[#allocation5 + $0x558] sm:$0xff]
    %v245 = vld [vmem:[#allocation5 + $0x560] sm:$0xff]
    %v246 = vld [vmem:[#allocation5 + $0x568] sm:$0xff]
    %v247 = vld [vmem:[#allocation5 + $0x570] sm:$0xff]
    %v248 = vld [vmem:[#allocation5 + $0x578] sm:$0xff]
    %v249 = vld [vmem:[#allocation5 + $0x580] sm:$0xff]
    %v250 = vld [vmem:[#allocation5 + $0x588] sm:$0xff]
    %v251 = vld [vmem:[#allocation5 + $0x590] sm:$0xff]
    %v252 = vld [vmem:[#allocation5 + $0x598] sm:$0xff]
    %v253 = vld [vmem:[#allocation5 + $0x5a0] sm:$0xff]
    %v254 = vld [vmem:[#allocation5 + $0x5a8] sm:$0xff]
    %v255 = vld [vmem:[#allocation5 + $0x5b0] sm:$0xff]
    %v256 = vld [vmem:[#allocation5 + $0x5b8] sm:$0xff]
    %v257 = vld [vmem:[#allocation5 + $0x5c0] sm:$0xff]
    %v258 = vld [vmem:[#allocation5 + $0x5c8] sm:$0xff]
    %v259 = vld [vmem:[#allocation5 + $0x5d0] sm:$0xff]
    %v260 = vld [vmem:[#allocation5 + $0x5d8] sm:$0xff]
    %v261 = vld [vmem:[#allocation5 + $0x5e0] sm:$0xff]
    %v262 = vld [vmem:[#allocation5 + $0x5e8] sm:$0xff]
    %v263 = vld [vmem:[#allocation5 + $0x5f0] sm:$0xff]
    %v264 = vld [vmem:[#allocation5 + $0x5f8] sm:$0xff]
    %v265 = vld [vmem:[#allocation5 + $0x600] sm:$0xff]
    %v266 = vld [vmem:[#allocation5 + $0x608] sm:$0xff]
    %v267 = vld [vmem:[#allocation5 + $0x610] sm:$0xff]
    %v268 = vld [vmem:[#allocation5 + $0x618] sm:$0xff]
    %v269 = vld [vmem:[#allocation5 + $0x620] sm:$0xff]
    %v270 = vld [vmem:[#allocation5 + $0x628] sm:$0xff]
    %v271 = vld [vmem:[#allocation5 + $0x630] sm:$0xff]
    %v272 = vld [vmem:[#allocation5 + $0x638] sm:$0xff]
    %v273 = vld [vmem:[#allocation5 + $0x640] sm:$0xff]
    %v274 = vld [vmem:[#allocation5 + $0x648] sm:$0xff]
    %v275 = vld [vmem:[#allocation5 + $0x650] sm:$0xff]
    %v276 = vld [vmem:[#allocation5 + $0x658] sm:$0xff]
    %v277 = vld [vmem:[#allocation5 + $0x660] sm:$0xff]
    %v278 = vld [vmem:[#allocation5 + $0x668] sm:$0xff]
    %v279 = vld [vmem:[#allocation5 + $0x670] sm:$0xff]
    %v280 = vld [vmem:[#allocation5 + $0x678] sm:$0xff]
    %v281 = vld [vmem:[#allocation5 + $0x680] sm:$0xff]
    %v282 = vld [vmem:[#allocation5 + $0x688] sm:$0xff]
    %v283 = vld [vmem:[#allocation5 + $0x690] sm:$0xff]
    %v284 = vld [vmem:[#allocation5 + $0x698] sm:$0xff]
    %v285 = vld [vmem:[#allocation5 + $0x6a0] sm:$0xff]
    %v286 = vld [vmem:[#allocation5 + $0x6a8] sm:$0xff]
    %v287 = vld [vmem:[#allocation5 + $0x6b0] sm:$0xff]
    %v288 = vld [vmem:[#allocation5 + $0x6b8] sm:$0xff]
    %v289 = vld [vmem:[#allocation5 + $0x6c0] sm:$0xff]
    %v290 = vld [vmem:[#allocation5 + $0x6c8] sm:$0xff]
    %v291 = vld [vmem:[#allocation5 + $0x6d0] sm:$0xff]
    %v292 = vld [vmem:[#allocation5 + $0x6d8] sm:$0xff]
    %v293 = vld [vmem:[#allocation5 + $0x6e0] sm:$0xff]
    %v294 = vld [vmem:[#allocation5 + $0x6e8] sm:$0xff]
    %v295 = vld [vmem:[#allocation5 + $0x6f0] sm:$0xff]
    %v296 = vld [vmem:[#allocation5 + $0x6f8] sm:$0xff]
    %v297 = vld [vmem:[#allocation5 + $0x700] sm:$0xff]
    %v298 = vld [vmem:[#allocation5 + $0x708] sm:$0xff]
    %v299 = vld [vmem:[#allocation5 + $0x710] sm:$0xff]
    %v300 = vld [vmem:[#allocation5 + $0x718] sm:$0xff]
    %v301 = vld [vmem:[#allocation5 + $0x720] sm:$0xff]
    %v302 = vld [vmem:[#allocation5 + $0x728] sm:$0xff]
    %v303 = vld [vmem:[#allocation5 + $0x730] sm:$0xff]
    %v304 = vld [vmem:[#allocation5 + $0x738] sm:$0xff]
    %v305 = vld [vmem:[#allocation5 + $0x740] sm:$0xff]
    %v306 = vld [vmem:[#allocation5 + $0x748] sm:$0xff]
    %v307 = vld [vmem:[#allocation5 + $0x750] sm:$0xff]
    %v308 = vld [vmem:[#allocation5 + $0x758] sm:$0xff]
    %v309 = vld [vmem:[#allocation5 + $0x760] sm:$0xff]
    %v310 = vld [vmem:[#allocation5 + $0x768] sm:$0xff]
    %v311 = vld [vmem:[#allocation5 + $0x770] sm:$0xff]
    %v312 = vld [vmem:[#allocation5 + $0x778] sm:$0xff]
    %v313 = vld [vmem:[#allocation5 + $0x780] sm:$0xff]
    %v314 = vld [vmem:[#allocation5 + $0x788] sm:$0xff]
    %v315 = vld [vmem:[#allocation5 + $0x790] sm:$0xff]
    %v316 = vld [vmem:[#allocation5 + $0x798] sm:$0xff]
    %v317 = vld [vmem:[#allocation5 + $0x7a0] sm:$0xff]
    %v318 = vld [vmem:[#allocation5 + $0x7a8] sm:$0xff]
    %v319 = vld [vmem:[#allocation5 + $0x7b0] sm:$0xff]
    %v320 = vld [vmem:[#allocation5 + $0x7b8] sm:$0xff]
    %v321 = vld [vmem:[#allocation5 + $0x7c0] sm:$0xff]
    %v322 = vld [vmem:[#allocation5 + $0x7c8] sm:$0xff]
    %v323 = vld [vmem:[#allocation5 + $0x7d0] sm:$0xff]
    %v324 = vld [vmem:[#allocation5 + $0x7d8] sm:$0xff]
    %v325 = vld [vmem:[#allocation5 + $0x7e0] sm:$0xff]
    %v326 = vld [vmem:[#allocation5 + $0x7e8] sm:$0xff]
    %v327 = vld [vmem:[#allocation5 + $0x7f0] sm:$0xff]
    %v328 = vld [vmem:[#allocation5 + $0x7f8] sm:$0xff]
    %v585 = vunpack.c.l.b16 %v73
    %v586 = vunpack.c.h.b16 %v73
    %v587 = vunpack.c.l.b16 %v74
    %v588 = vunpack.c.h.b16 %v74
    %v589 = vunpack.c.l.b16 %v75
    %v590 = vunpack.c.h.b16 %v75
    %v591 = vunpack.c.l.b16 %v76
    %v592 = vunpack.c.h.b16 %v76
    %v593 = vunpack.c.l.b16 %v77
    %v594 = vunpack.c.h.b16 %v77
    %v595 = vunpack.c.l.b16 %v78
    %v596 = vunpack.c.h.b16 %v78
    %v597 = vunpack.c.l.b16 %v79
    %v598 = vunpack.c.h.b16 %v79
    %v599 = vunpack.c.l.b16 %v80
    %v600 = vunpack.c.h.b16 %v80
    %v601 = vunpack.c.l.b16 %v81
    %v602 = vunpack.c.h.b16 %v81
    %v603 = vunpack.c.l.b16 %v82
    %v604 = vunpack.c.h.b16 %v82
    %v605 = vunpack.c.l.b16 %v83
    %v606 = vunpack.c.h.b16 %v83
    %v607 = vunpack.c.l.b16 %v84
    %v608 = vunpack.c.h.b16 %v84
    %v609 = vunpack.c.l.b16 %v85
    %v610 = vunpack.c.h.b16 %v85
    %v611 = vunpack.c.l.b16 %v86
    %v612 = vunpack.c.h.b16 %v86
    %v613 = vunpack.c.l.b16 %v87
    %v614 = vunpack.c.h.b16 %v87
    %v615 = vunpack.c.l.b16 %v88
    %v616 = vunpack.c.h.b16 %v88
    %v617 = vunpack.c.l.b16 %v89
    %v618 = vunpack.c.h.b16 %v89
    %v619 = vunpack.c.l.b16 %v90
    %v620 = vunpack.c.h.b16 %v90
    %v621 = vunpack.c.l.b16 %v91
    %v622 = vunpack.c.h.b16 %v91
    %v623 = vunpack.c.l.b16 %v92
    %v624 = vunpack.c.h.b16 %v92
    %v625 = vunpack.c.l.b16 %v93
    %v626 = vunpack.c.h.b16 %v93
    %v627 = vunpack.c.l.b16 %v94
    %v628 = vunpack.c.h.b16 %v94
    %v629 = vunpack.c.l.b16 %v95
    %v630 = vunpack.c.h.b16 %v95
    %v631 = vunpack.c.l.b16 %v96
    %v632 = vunpack.c.h.b16 %v96
    %v633 = vunpack.c.l.b16 %v97
    %v634 = vunpack.c.h.b16 %v97
    %v635 = vunpack.c.l.b16 %v98
    %v636 = vunpack.c.h.b16 %v98
    %v637 = vunpack.c.l.b16 %v99
    %v638 = vunpack.c.h.b16 %v99
    %v639 = vunpack.c.l.b16 %v100
    %v640 = vunpack.c.h.b16 %v100
    %v641 = vunpack.c.l.b16 %v101
    %v642 = vunpack.c.h.b16 %v101
    %v643 = vunpack.c.l.b16 %v102
    %v644 = vunpack.c.h.b16 %v102
    %v645 = vunpack.c.l.b16 %v103
    %v646 = vunpack.c.h.b16 %v103
    %v647 = vunpack.c.l.b16 %v104
    %v648 = vunpack.c.h.b16 %v104
    %v649 = vunpack.c.l.b16 %v105
    %v650 = vunpack.c.h.b16 %v105
    %v651 = vunpack.c.l.b16 %v106
    %v652 = vunpack.c.h.b16 %v106
    %v653 = vunpack.c.l.b16 %v107
    %v654 = vunpack.c.h.b16 %v107
    %v655 = vunpack.c.l.b16 %v108
    %v656 = vunpack.c.h.b16 %v108
    %v657 = vunpack.c.l.b16 %v109
    %v658 = vunpack.c.h.b16 %v109
    %v659 = vunpack.c.l.b16 %v110
    %v660 = vunpack.c.h.b16 %v110
    %v661 = vunpack.c.l.b16 %v111
    %v662 = vunpack.c.h.b16 %v111
    %v663 = vunpack.c.l.b16 %v112
    %v664 = vunpack.c.h.b16 %v112
    %v665 = vunpack.c.l.b16 %v113
    %v666 = vunpack.c.h.b16 %v113
    %v667 = vunpack.c.l.b16 %v114
    %v668 = vunpack.c.h.b16 %v114
    %v669 = vunpack.c.l.b16 %v115
    %v670 = vunpack.c.h.b16 %v115
    %v671 = vunpack.c.l.b16 %v116
    %v672 = vunpack.c.h.b16 %v116
    %v673 = vunpack.c.l.b16 %v117
    %v674 = vunpack.c.h.b16 %v117
    %v675 = vunpack.c.l.b16 %v118
    %v676 = vunpack.c.h.b16 %v118
    %v677 = vunpack.c.l.b16 %v119
    %v678 = vunpack.c.h.b16 %v119
    %v679 = vunpack.c.l.b16 %v120
    %v680 = vunpack.c.h.b16 %v120
    %v681 = vunpack.c.l.b16 %v121
    %v682 = vunpack.c.h.b16 %v121
    %v683 = vunpack.c.l.b16 %v122
    %v684 = vunpack.c.h.b16 %v122
    %v685 = vunpack.c.l.b16 %v123
    %v686 = vunpack.c.h.b16 %v123
    %v687 = vunpack.c.l.b16 %v124
    %v688 = vunpack.c.h.b16 %v124
    %v689 = vunpack.c.l.b16 %v125
    %v690 = vunpack.c.h.b16 %v125
    %v691 = vunpack.c.l.b16 %v126
    %v692 = vunpack.c.h.b16 %v126
    %v693 = vunpack.c.l.b16 %v127
    %v694 = vunpack.c.h.b16 %v127
    %v695 = vunpack.c.l.b16 %v128
    %v696 = vunpack.c.h.b16 %v128
    %v697 = vunpack.c.l.b16 %v129
    %v698 = vunpack.c.h.b16 %v129
    %v699 = vunpack.c.l.b16 %v130
    %v700 = vunpack.c.h.b16 %v130
    %v701 = vunpack.c.l.b16 %v131
    %v702 = vunpack.c.h.b16 %v131
    %v703 = vunpack.c.l.b16 %v132
    %v704 = vunpack.c.h.b16 %v132
    %v705 = vunpack.c.l.b16 %v133
    %v706 = vunpack.c.h.b16 %v133
    %v707 = vunpack.c.l.b16 %v134
    %v708 = vunpack.c.h.b16 %v134
    %v709 = vunpack.c.l.b16 %v135
    %v710 = vunpack.c.h.b16 %v135
    %v711 = vunpack.c.l.b16 %v136
    %v712 = vunpack.c.h.b16 %v136
    %v713 = vunpack.c.l.b16 %v137
    %v714 = vunpack.c.h.b16 %v137
    %v715 = vunpack.c.l.b16 %v138
    %v716 = vunpack.c.h.b16 %v138
    %v717 = vunpack.c.l.b16 %v139
    %v718 = vunpack.c.h.b16 %v139
    %v719 = vunpack.c.l.b16 %v140
    %v720 = vunpack.c.h.b16 %v140
    %v721 = vunpack.c.l.b16 %v141
    %v722 = vunpack.c.h.b16 %v141
    %v723 = vunpack.c.l.b16 %v142
    %v724 = vunpack.c.h.b16 %v142
    %v725 = vunpack.c.l.b16 %v143
    %v726 = vunpack.c.h.b16 %v143
    %v727 = vunpack.c.l.b16 %v144
    %v728 = vunpack.c.h.b16 %v144
    %v729 = vunpack.c.l.b16 %v145
    %v730 = vunpack.c.h.b16 %v145
    %v731 = vunpack.c.l.b16 %v146
    %v732 = vunpack.c.h.b16 %v146
    %v733 = vunpack.c.l.b16 %v147
    %v734 = vunpack.c.h.b16 %v147
    %v735 = vunpack.c.l.b16 %v148
    %v736 = vunpack.c.h.b16 %v148
    %v737 = vunpack.c.l.b16 %v149
    %v738 = vunpack.c.h.b16 %v149
    %v739 = vunpack.c.l.b16 %v150
    %v740 = vunpack.c.h.b16 %v150
    %v741 = vunpack.c.l.b16 %v151
    %v742 = vunpack.c.h.b16 %v151
    %v743 = vunpack.c.l.b16 %v152
    %v744 = vunpack.c.h.b16 %v152
    %v745 = vunpack.c.l.b16 %v153
    %v746 = vunpack.c.h.b16 %v153
    %v747 = vunpack.c.l.b16 %v154
    %v748 = vunpack.c.h.b16 %v154
    %v749 = vunpack.c.l.b16 %v155
    %v750 = vunpack.c.h.b16 %v155
    %v751 = vunpack.c.l.b16 %v156
    %v752 = vunpack.c.h.b16 %v156
    %v753 = vunpack.c.l.b16 %v157
    %v754 = vunpack.c.h.b16 %v157
    %v755 = vunpack.c.l.b16 %v158
    %v756 = vunpack.c.h.b16 %v158
    %v757 = vunpack.c.l.b16 %v159
    %v758 = vunpack.c.h.b16 %v159
    %v759 = vunpack.c.l.b16 %v160
    %v760 = vunpack.c.h.b16 %v160
    %v761 = vunpack.c.l.b16 %v161
    %v762 = vunpack.c.h.b16 %v161
    %v763 = vunpack.c.l.b16 %v162
    %v764 = vunpack.c.h.b16 %v162
    %v765 = vunpack.c.l.b16 %v163
    %v766 = vunpack.c.h.b16 %v163
    %v767 = vunpack.c.l.b16 %v164
    %v768 = vunpack.c.h.b16 %v164
    %v769 = vunpack.c.l.b16 %v165
    %v770 = vunpack.c.h.b16 %v165
    %v771 = vunpack.c.l.b16 %v166
    %v772 = vunpack.c.h.b16 %v166
    %v773 = vunpack.c.l.b16 %v167
    %v774 = vunpack.c.h.b16 %v167
    %v775 = vunpack.c.l.b16 %v168
    %v776 = vunpack.c.h.b16 %v168
    %v777 = vunpack.c.l.b16 %v169
    %v778 = vunpack.c.h.b16 %v169
    %v779 = vunpack.c.l.b16 %v170
    %v780 = vunpack.c.h.b16 %v170
    %v781 = vunpack.c.l.b16 %v171
    %v782 = vunpack.c.h.b16 %v171
    %v783 = vunpack.c.l.b16 %v172
    %v784 = vunpack.c.h.b16 %v172
    %v785 = vunpack.c.l.b16 %v173
    %v786 = vunpack.c.h.b16 %v173
    %v787 = vunpack.c.l.b16 %v174
    %v788 = vunpack.c.h.b16 %v174
    %v789 = vunpack.c.l.b16 %v175
    %v790 = vunpack.c.h.b16 %v175
    %v791 = vunpack.c.l.b16 %v176
    %v792 = vunpack.c.h.b16 %v176
    %v793 = vunpack.c.l.b16 %v177
    %v794 = vunpack.c.h.b16 %v177
    %v795 = vunpack.c.l.b16 %v178
    %v796 = vunpack.c.h.b16 %v178
    %v797 = vunpack.c.l.b16 %v179
    %v798 = vunpack.c.h.b16 %v179
    %v799 = vunpack.c.l.b16 %v180
    %v800 = vunpack.c.h.b16 %v180
    %v801 = vunpack.c.l.b16 %v181
    %v802 = vunpack.c.h.b16 %v181
    %v803 = vunpack.c.l.b16 %v182
    %v804 = vunpack.c.h.b16 %v182
    %v805 = vunpack.c.l.b16 %v183
    %v806 = vunpack.c.h.b16 %v183
    %v807 = vunpack.c.l.b16 %v184
    %v808 = vunpack.c.h.b16 %v184
    %v809 = vunpack.c.l.b16 %v185
    %v810 = vunpack.c.h.b16 %v185
    %v811 = vunpack.c.l.b16 %v186
    %v812 = vunpack.c.h.b16 %v186
    %v813 = vunpack.c.l.b16 %v187
    %v814 = vunpack.c.h.b16 %v187
    %v815 = vunpack.c.l.b16 %v188
    %v816 = vunpack.c.h.b16 %v188
    %v817 = vunpack.c.l.b16 %v189
    %v818 = vunpack.c.h.b16 %v189
    %v819 = vunpack.c.l.b16 %v190
    %v820 = vunpack.c.h.b16 %v190
    %v821 = vunpack.c.l.b16 %v191
    %v822 = vunpack.c.h.b16 %v191
    %v823 = vunpack.c.l.b16 %v192
    %v824 = vunpack.c.h.b16 %v192
    %v825 = vunpack.c.l.b16 %v193
    %v826 = vunpack.c.h.b16 %v193
    %v827 = vunpack.c.l.b16 %v194
    %v828 = vunpack.c.h.b16 %v194
    %v829 = vunpack.c.l.b16 %v195
    %v830 = vunpack.c.h.b16 %v195
    %v831 = vunpack.c.l.b16 %v196
    %v832 = vunpack.c.h.b16 %v196
    %v833 = vunpack.c.l.b16 %v197
    %v834 = vunpack.c.h.b16 %v197
    %v835 = vunpack.c.l.b16 %v198
    %v836 = vunpack.c.h.b16 %v198
    %v837 = vunpack.c.l.b16 %v199
    %v838 = vunpack.c.h.b16 %v199
    %v839 = vunpack.c.l.b16 %v200
    %v840 = vunpack.c.h.b16 %v200
    %v841 = vunpack.c.l.b16 %v201
    %v842 = vunpack.c.h.b16 %v201
    %v843 = vunpack.c.l.b16 %v202
    %v844 = vunpack.c.h.b16 %v202
    %v845 = vunpack.c.l.b16 %v203
    %v846 = vunpack.c.h.b16 %v203
    %v847 = vunpack.c.l.b16 %v204
    %v848 = vunpack.c.h.b16 %v204
    %v849 = vunpack.c.l.b16 %v205
    %v850 = vunpack.c.h.b16 %v205
    %v851 = vunpack.c.l.b16 %v206
    %v852 = vunpack.c.h.b16 %v206
    %v853 = vunpack.c.l.b16 %v207
    %v854 = vunpack.c.h.b16 %v207
    %v855 = vunpack.c.l.b16 %v208
    %v856 = vunpack.c.h.b16 %v208
    %v857 = vunpack.c.l.b16 %v209
    %v858 = vunpack.c.h.b16 %v209
    %v859 = vunpack.c.l.b16 %v210
    %v860 = vunpack.c.h.b16 %v210
    %v861 = vunpack.c.l.b16 %v211
    %v862 = vunpack.c.h.b16 %v211
    %v863 = vunpack.c.l.b16 %v212
    %v864 = vunpack.c.h.b16 %v212
    %v865 = vunpack.c.l.b16 %v213
    %v866 = vunpack.c.h.b16 %v213
    %v867 = vunpack.c.l.b16 %v214
    %v868 = vunpack.c.h.b16 %v214
    %v869 = vunpack.c.l.b16 %v215
    %v870 = vunpack.c.h.b16 %v215
    %v871 = vunpack.c.l.b16 %v216
    %v872 = vunpack.c.h.b16 %v216
    %v873 = vunpack.c.l.b16 %v217
    %v874 = vunpack.c.h.b16 %v217
    %v875 = vunpack.c.l.b16 %v218
    %v876 = vunpack.c.h.b16 %v218
    %v877 = vunpack.c.l.b16 %v219
    %v878 = vunpack.c.h.b16 %v219
    %v879 = vunpack.c.l.b16 %v220
    %v880 = vunpack.c.h.b16 %v220
    %v881 = vunpack.c.l.b16 %v221
    %v882 = vunpack.c.h.b16 %v221
    %v883 = vunpack.c.l.b16 %v222
    %v884 = vunpack.c.h.b16 %v222
    %v885 = vunpack.c.l.b16 %v223
    %v886 = vunpack.c.h.b16 %v223
    %v887 = vunpack.c.l.b16 %v224
    %v888 = vunpack.c.h.b16 %v224
    %v889 = vunpack.c.l.b16 %v225
    %v890 = vunpack.c.h.b16 %v225
    %v891 = vunpack.c.l.b16 %v226
    %v892 = vunpack.c.h.b16 %v226
    %v893 = vunpack.c.l.b16 %v227
    %v894 = vunpack.c.h.b16 %v227
    %v895 = vunpack.c.l.b16 %v228
    %v896 = vunpack.c.h.b16 %v228
    %v897 = vunpack.c.l.b16 %v229
    %v898 = vunpack.c.h.b16 %v229
    %v899 = vunpack.c.l.b16 %v230
    %v900 = vunpack.c.h.b16 %v230
    %v901 = vunpack.c.l.b16 %v231
    %v902 = vunpack.c.h.b16 %v231
    %v903 = vunpack.c.l.b16 %v232
    %v904 = vunpack.c.h.b16 %v232
    %v905 = vunpack.c.l.b16 %v233
    %v906 = vunpack.c.h.b16 %v233
    %v907 = vunpack.c.l.b16 %v234
    %v908 = vunpack.c.h.b16 %v234
    %v909 = vunpack.c.l.b16 %v235
    %v910 = vunpack.c.h.b16 %v235
    %v911 = vunpack.c.l.b16 %v236
    %v912 = vunpack.c.h.b16 %v236
    %v913 = vunpack.c.l.b16 %v237
    %v914 = vunpack.c.h.b16 %v237
    %v915 = vunpack.c.l.b16 %v238
    %v916 = vunpack.c.h.b16 %v238
    %v917 = vunpack.c.l.b16 %v239
    %v918 = vunpack.c.h.b16 %v239
    %v919 = vunpack.c.l.b16 %v240
    %v920 = vunpack.c.h.b16 %v240
    %v921 = vunpack.c.l.b16 %v241
    %v922 = vunpack.c.h.b16 %v241
    %v923 = vunpack.c.l.b16 %v242
    %v924 = vunpack.c.h.b16 %v242
    %v925 = vunpack.c.l.b16 %v243
    %v926 = vunpack.c.h.b16 %v243
    %v927 = vunpack.c.l.b16 %v244
    %v928 = vunpack.c.h.b16 %v244
    %v929 = vunpack.c.l.b16 %v245
    %v930 = vunpack.c.h.b16 %v245
    %v931 = vunpack.c.l.b16 %v246
    %v932 = vunpack.c.h.b16 %v246
    %v933 = vunpack.c.l.b16 %v247
    %v934 = vunpack.c.h.b16 %v247
    %v935 = vunpack.c.l.b16 %v248
    %v936 = vunpack.c.h.b16 %v248
    %v937 = vunpack.c.l.b16 %v249
    %v938 = vunpack.c.h.b16 %v249
    %v939 = vunpack.c.l.b16 %v250
    %v940 = vunpack.c.h.b16 %v250
    %v941 = vunpack.c.l.b16 %v251
    %v942 = vunpack.c.h.b16 %v251
    %v943 = vunpack.c.l.b16 %v252
    %v944 = vunpack.c.h.b16 %v252
    %v945 = vunpack.c.l.b16 %v253
    %v946 = vunpack.c.h.b16 %v253
    %v947 = vunpack.c.l.b16 %v254
    %v948 = vunpack.c.h.b16 %v254
    %v949 = vunpack.c.l.b16 %v255
    %v950 = vunpack.c.h.b16 %v255
    %v951 = vunpack.c.l.b16 %v256
    %v952 = vunpack.c.h.b16 %v256
    %v953 = vunpack.c.l.b16 %v257
    %v954 = vunpack.c.h.b16 %v257
    %v955 = vunpack.c.l.b16 %v258
    %v956 = vunpack.c.h.b16 %v258
    %v957 = vunpack.c.l.b16 %v259
    %v958 = vunpack.c.h.b16 %v259
    %v959 = vunpack.c.l.b16 %v260
    %v960 = vunpack.c.h.b16 %v260
    %v961 = vunpack.c.l.b16 %v261
    %v962 = vunpack.c.h.b16 %v261
    %v963 = vunpack.c.l.b16 %v262
    %v964 = vunpack.c.h.b16 %v262
    %v965 = vunpack.c.l.b16 %v263
    %v966 = vunpack.c.h.b16 %v263
    %v967 = vunpack.c.l.b16 %v264
    %v968 = vunpack.c.h.b16 %v264
    %v969 = vunpack.c.l.b16 %v265
    %v970 = vunpack.c.h.b16 %v265
    %v971 = vunpack.c.l.b16 %v266
    %v972 = vunpack.c.h.b16 %v266
    %v973 = vunpack.c.l.b16 %v267
    %v974 = vunpack.c.h.b16 %v267
    %v975 = vunpack.c.l.b16 %v268
    %v976 = vunpack.c.h.b16 %v268
    %v977 = vunpack.c.l.b16 %v269
    %v978 = vunpack.c.h.b16 %v269
    %v979 = vunpack.c.l.b16 %v270
    %v980 = vunpack.c.h.b16 %v270
    %v981 = vunpack.c.l.b16 %v271
    %v982 = vunpack.c.h.b16 %v271
    %v983 = vunpack.c.l.b16 %v272
    %v984 = vunpack.c.h.b16 %v272
    %v985 = vunpack.c.l.b16 %v273
    %v986 = vunpack.c.h.b16 %v273
    %v987 = vunpack.c.l.b16 %v274
    %v988 = vunpack.c.h.b16 %v274
    %v989 = vunpack.c.l.b16 %v275
    %v990 = vunpack.c.h.b16 %v275
    %v991 = vunpack.c.l.b16 %v276
    %v992 = vunpack.c.h.b16 %v276
    %v993 = vunpack.c.l.b16 %v277
    %v994 = vunpack.c.h.b16 %v277
    %v995 = vunpack.c.l.b16 %v278
    %v996 = vunpack.c.h.b16 %v278
    %v997 = vunpack.c.l.b16 %v279
    %v998 = vunpack.c.h.b16 %v279
    %v999 = vunpack.c.l.b16 %v280
    %v1000 = vunpack.c.h.b16 %v280
    %v1001 = vunpack.c.l.b16 %v281
    %v1002 = vunpack.c.h.b16 %v281
    %v1003 = vunpack.c.l.b16 %v282
    %v1004 = vunpack.c.h.b16 %v282
    %v1005 = vunpack.c.l.b16 %v283
    %v1006 = vunpack.c.h.b16 %v283
    %v1007 = vunpack.c.l.b16 %v284
    %v1008 = vunpack.c.h.b16 %v284
    %v1009 = vunpack.c.l.b16 %v285
    %v1010 = vunpack.c.h.b16 %v285
    %v1011 = vunpack.c.l.b16 %v286
    %v1012 = vunpack.c.h.b16 %v286
    %v1013 = vunpack.c.l.b16 %v287
    %v1014 = vunpack.c.h.b16 %v287
    %v1015 = vunpack.c.l.b16 %v288
    %v1016 = vunpack.c.h.b16 %v288
    %v1017 = vunpack.c.l.b16 %v289
    %v1018 = vunpack.c.h.b16 %v289
    %v1019 = vunpack.c.l.b16 %v290
    %v1020 = vunpack.c.h.b16 %v290
    %v1021 = vunpack.c.l.b16 %v291
    %v1022 = vunpack.c.h.b16 %v291
    %v1023 = vunpack.c.l.b16 %v292
    %v1024 = vunpack.c.h.b16 %v292
    %v1025 = vunpack.c.l.b16 %v293
    %v1026 = vunpack.c.h.b16 %v293
    %v1027 = vunpack.c.l.b16 %v294
    %v1028 = vunpack.c.h.b16 %v294
    %v1029 = vunpack.c.l.b16 %v295
    %v1030 = vunpack.c.h.b16 %v295
    %v1031 = vunpack.c.l.b16 %v296
    %v1032 = vunpack.c.h.b16 %v296
    %v1033 = vunpack.c.l.b16 %v297
    %v1034 = vunpack.c.h.b16 %v297
    %v1035 = vunpack.c.l.b16 %v298
    %v1036 = vunpack.c.h.b16 %v298
    %v1037 = vunpack.c.l.b16 %v299
    %v1038 = vunpack.c.h.b16 %v299
    %v1039 = vunpack.c.l.b16 %v300
    %v1040 = vunpack.c.h.b16 %v300
    %v1041 = vunpack.c.l.b16 %v301
    %v1042 = vunpack.c.h.b16 %v301
    %v1043 = vunpack.c.l.b16 %v302
    %v1044 = vunpack.c.h.b16 %v302
    %v1045 = vunpack.c.l.b16 %v303
    %v1046 = vunpack.c.h.b16 %v303
    %v1047 = vunpack.c.l.b16 %v304
    %v1048 = vunpack.c.h.b16 %v304
    %v1049 = vunpack.c.l.b16 %v305
    %v1050 = vunpack.c.h.b16 %v305
    %v1051 = vunpack.c.l.b16 %v306
    %v1052 = vunpack.c.h.b16 %v306
    %v1053 = vunpack.c.l.b16 %v307
    %v1054 = vunpack.c.h.b16 %v307
    %v1055 = vunpack.c.l.b16 %v308
    %v1056 = vunpack.c.h.b16 %v308
    %v1057 = vunpack.c.l.b16 %v309
    %v1058 = vunpack.c.h.b16 %v309
    %v1059 = vunpack.c.l.b16 %v310
    %v1060 = vunpack.c.h.b16 %v310
    %v1061 = vunpack.c.l.b16 %v311
    %v1062 = vunpack.c.h.b16 %v311
    %v1063 = vunpack.c.l.b16 %v312
    %v1064 = vunpack.c.h.b16 %v312
    %v1065 = vunpack.c.l.b16 %v313
    %v1066 = vunpack.c.h.b16 %v313
    %v1067 = vunpack.c.l.b16 %v314
    %v1068 = vunpack.c.h.b16 %v314
    %v1069 = vunpack.c.l.b16 %v315
    %v1070 = vunpack.c.h.b16 %v315
    %v1071 = vunpack.c.l.b16 %v316
    %v1072 = vunpack.c.h.b16 %v316
    %v1073 = vunpack.c.l.b16 %v317
    %v1074 = vunpack.c.h.b16 %v317
    %v1075 = vunpack.c.l.b16 %v318
    %v1076 = vunpack.c.h.b16 %v318
    %v1077 = vunpack.c.l.b16 %v319
    %v1078 = vunpack.c.h.b16 %v319
    %v1079 = vunpack.c.l.b16 %v320
    %v1080 = vunpack.c.h.b16 %v320
    %v1081 = vunpack.c.l.b16 %v321
    %v1082 = vunpack.c.h.b16 %v321
    %v1083 = vunpack.c.l.b16 %v322
    %v1084 = vunpack.c.h.b16 %v322
    %v1085 = vunpack.c.l.b16 %v323
    %v1086 = vunpack.c.h.b16 %v323
    %v1087 = vunpack.c.l.b16 %v324
    %v1088 = vunpack.c.h.b16 %v324
    %v1089 = vunpack.c.l.b16 %v325
    %v1090 = vunpack.c.h.b16 %v325
    %v1091 = vunpack.c.l.b16 %v326
    %v1092 = vunpack.c.h.b16 %v326
    %v1093 = vunpack.c.l.b16 %v327
    %v1094 = vunpack.c.h.b16 %v327
    %v1095 = vunpack.c.l.b16 %v328
    %v1096 = vunpack.c.h.b16 %v328
    %v1097 = vpack.c.b16 %v587, %v585
    %v1098 = vpack.c.b16 %v588, %v586
    %v1099 = vpack.c.b16 %v591, %v589
    %v1100 = vpack.c.b16 %v592, %v590
    %v1101 = vpack.c.b16 %v595, %v593
    %v1102 = vpack.c.b16 %v596, %v594
    %v1103 = vpack.c.b16 %v599, %v597
    %v1104 = vpack.c.b16 %v600, %v598
    %v1105 = vpack.c.b16 %v603, %v601
    %v1106 = vpack.c.b16 %v604, %v602
    %v1107 = vpack.c.b16 %v607, %v605
    %v1108 = vpack.c.b16 %v608, %v606
    %v1109 = vpack.c.b16 %v611, %v609
    %v1110 = vpack.c.b16 %v612, %v610
    %v1111 = vpack.c.b16 %v615, %v613
    %v1112 = vpack.c.b16 %v616, %v614
    %v1113 = vpack.c.b16 %v619, %v617
    %v1114 = vpack.c.b16 %v620, %v618
    %v1115 = vpack.c.b16 %v623, %v621
    %v1116 = vpack.c.b16 %v624, %v622
    %v1117 = vpack.c.b16 %v627, %v625
    %v1118 = vpack.c.b16 %v628, %v626
    %v1119 = vpack.c.b16 %v631, %v629
    %v1120 = vpack.c.b16 %v632, %v630
    %v1121 = vpack.c.b16 %v635, %v633
    %v1122 = vpack.c.b16 %v636, %v634
    %v1123 = vpack.c.b16 %v639, %v637
    %v1124 = vpack.c.b16 %v640, %v638
    %v1125 = vpack.c.b16 %v643, %v641
    %v1126 = vpack.c.b16 %v644, %v642
    %v1127 = vpack.c.b16 %v647, %v645
    %v1128 = vpack.c.b16 %v648, %v646
    %v1129 = vpack.c.b16 %v651, %v649
    %v1130 = vpack.c.b16 %v652, %v650
    %v1131 = vpack.c.b16 %v655, %v653
    %v1132 = vpack.c.b16 %v656, %v654
    %v1133 = vpack.c.b16 %v659, %v657
    %v1134 = vpack.c.b16 %v660, %v658
    %v1135 = vpack.c.b16 %v663, %v661
    %v1136 = vpack.c.b16 %v664, %v662
    %v1137 = vpack.c.b16 %v667, %v665
    %v1138 = vpack.c.b16 %v668, %v666
    %v1139 = vpack.c.b16 %v671, %v669
    %v1140 = vpack.c.b16 %v672, %v670
    %v1141 = vpack.c.b16 %v675, %v673
    %v1142 = vpack.c.b16 %v676, %v674
    %v1143 = vpack.c.b16 %v679, %v677
    %v1144 = vpack.c.b16 %v680, %v678
    %v1145 = vpack.c.b16 %v683, %v681
    %v1146 = vpack.c.b16 %v684, %v682
    %v1147 = vpack.c.b16 %v687, %v685
    %v1148 = vpack.c.b16 %v688, %v686
    %v1149 = vpack.c.b16 %v691, %v689
    %v1150 = vpack.c.b16 %v692, %v690
    %v1151 = vpack.c.b16 %v695, %v693
    %v1152 = vpack.c.b16 %v696, %v694
    %v1153 = vpack.c.b16 %v699, %v697
    %v1154 = vpack.c.b16 %v700, %v698
    %v1155 = vpack.c.b16 %v703, %v701
    %v1156 = vpack.c.b16 %v704, %v702
    %v1157 = vpack.c.b16 %v707, %v705
    %v1158 = vpack.c.b16 %v708, %v706
    %v1159 = vpack.c.b16 %v711, %v709
    %v1160 = vpack.c.b16 %v712, %v710
    %v1161 = vpack.c.b16 %v715, %v713
    %v1162 = vpack.c.b16 %v716, %v714
    %v1163 = vpack.c.b16 %v719, %v717
    %v1164 = vpack.c.b16 %v720, %v718
    %v1165 = vpack.c.b16 %v723, %v721
    %v1166 = vpack.c.b16 %v724, %v722
    %v1167 = vpack.c.b16 %v727, %v725
    %v1168 = vpack.c.b16 %v728, %v726
    %v1169 = vpack.c.b16 %v731, %v729
    %v1170 = vpack.c.b16 %v732, %v730
    %v1171 = vpack.c.b16 %v735, %v733
    %v1172 = vpack.c.b16 %v736, %v734
    %v1173 = vpack.c.b16 %v739, %v737
    %v1174 = vpack.c.b16 %v740, %v738
    %v1175 = vpack.c.b16 %v743, %v741
    %v1176 = vpack.c.b16 %v744, %v742
    %v1177 = vpack.c.b16 %v747, %v745
    %v1178 = vpack.c.b16 %v748, %v746
    %v1179 = vpack.c.b16 %v751, %v749
    %v1180 = vpack.c.b16 %v752, %v750
    %v1181 = vpack.c.b16 %v755, %v753
    %v1182 = vpack.c.b16 %v756, %v754
    %v1183 = vpack.c.b16 %v759, %v757
    %v1184 = vpack.c.b16 %v760, %v758
    %v1185 = vpack.c.b16 %v763, %v761
    %v1186 = vpack.c.b16 %v764, %v762
    %v1187 = vpack.c.b16 %v767, %v765
    %v1188 = vpack.c.b16 %v768, %v766
    %v1189 = vpack.c.b16 %v771, %v769
    %v1190 = vpack.c.b16 %v772, %v770
    %v1191 = vpack.c.b16 %v775, %v773
    %v1192 = vpack.c.b16 %v776, %v774
    %v1193 = vpack.c.b16 %v779, %v777
    %v1194 = vpack.c.b16 %v780, %v778
    %v1195 = vpack.c.b16 %v783, %v781
    %v1196 = vpack.c.b16 %v784, %v782
    %v1197 = vpack.c.b16 %v787, %v785
    %v1198 = vpack.c.b16 %v788, %v786
    %v1199 = vpack.c.b16 %v791, %v789
    %v1200 = vpack.c.b16 %v792, %v790
    %v1201 = vpack.c.b16 %v795, %v793
    %v1202 = vpack.c.b16 %v796, %v794
    %v1203 = vpack.c.b16 %v799, %v797
    %v1204 = vpack.c.b16 %v800, %v798
    %v1205 = vpack.c.b16 %v803, %v801
    %v1206 = vpack.c.b16 %v804, %v802
    %v1207 = vpack.c.b16 %v807, %v805
    %v1208 = vpack.c.b16 %v808, %v806
    %v1209 = vpack.c.b16 %v811, %v809
    %v1210 = vpack.c.b16 %v812, %v810
    %v1211 = vpack.c.b16 %v815, %v813
    %v1212 = vpack.c.b16 %v816, %v814
    %v1213 = vpack.c.b16 %v819, %v817
    %v1214 = vpack.c.b16 %v820, %v818
    %v1215 = vpack.c.b16 %v823, %v821
    %v1216 = vpack.c.b16 %v824, %v822
    %v1217 = vpack.c.b16 %v827, %v825
    %v1218 = vpack.c.b16 %v828, %v826
    %v1219 = vpack.c.b16 %v831, %v829
    %v1220 = vpack.c.b16 %v832, %v830
    %v1221 = vpack.c.b16 %v835, %v833
    %v1222 = vpack.c.b16 %v836, %v834
    %v1223 = vpack.c.b16 %v839, %v837
    %v1224 = vpack.c.b16 %v840, %v838
    %v1225 = vpack.c.b16 %v843, %v841
    %v1226 = vpack.c.b16 %v844, %v842
    %v1227 = vpack.c.b16 %v847, %v845
    %v1228 = vpack.c.b16 %v848, %v846
    %v1229 = vpack.c.b16 %v851, %v849
    %v1230 = vpack.c.b16 %v852, %v850
    %v1231 = vpack.c.b16 %v855, %v853
    %v1232 = vpack.c.b16 %v856, %v854
    %v1233 = vpack.c.b16 %v859, %v857
    %v1234 = vpack.c.b16 %v860, %v858
    %v1235 = vpack.c.b16 %v863, %v861
    %v1236 = vpack.c.b16 %v864, %v862
    %v1237 = vpack.c.b16 %v867, %v865
    %v1238 = vpack.c.b16 %v868, %v866
    %v1239 = vpack.c.b16 %v871, %v869
    %v1240 = vpack.c.b16 %v872, %v870
    %v1241 = vpack.c.b16 %v875, %v873
    %v1242 = vpack.c.b16 %v876, %v874
    %v1243 = vpack.c.b16 %v879, %v877
    %v1244 = vpack.c.b16 %v880, %v878
    %v1245 = vpack.c.b16 %v883, %v881
    %v1246 = vpack.c.b16 %v884, %v882
    %v1247 = vpack.c.b16 %v887, %v885
    %v1248 = vpack.c.b16 %v888, %v886
    %v1249 = vpack.c.b16 %v891, %v889
    %v1250 = vpack.c.b16 %v892, %v890
    %v1251 = vpack.c.b16 %v895, %v893
    %v1252 = vpack.c.b16 %v896, %v894
    %v1253 = vpack.c.b16 %v899, %v897
    %v1254 = vpack.c.b16 %v900, %v898
    %v1255 = vpack.c.b16 %v903, %v901
    %v1256 = vpack.c.b16 %v904, %v902
    %v1257 = vpack.c.b16 %v907, %v905
    %v1258 = vpack.c.b16 %v908, %v906
    %v1259 = vpack.c.b16 %v911, %v909
    %v1260 = vpack.c.b16 %v912, %v910
    %v1261 = vpack.c.b16 %v915, %v913
    %v1262 = vpack.c.b16 %v916, %v914
    %v1263 = vpack.c.b16 %v919, %v917
    %v1264 = vpack.c.b16 %v920, %v918
    %v1265 = vpack.c.b16 %v923, %v921
    %v1266 = vpack.c.b16 %v924, %v922
    %v1267 = vpack.c.b16 %v927, %v925
    %v1268 = vpack.c.b16 %v928, %v926
    %v1269 = vpack.c.b16 %v931, %v929
    %v1270 = vpack.c.b16 %v932, %v930
    %v1271 = vpack.c.b16 %v935, %v933
    %v1272 = vpack.c.b16 %v936, %v934
    %v1273 = vpack.c.b16 %v939, %v937
    %v1274 = vpack.c.b16 %v940, %v938
    %v1275 = vpack.c.b16 %v943, %v941
    %v1276 = vpack.c.b16 %v944, %v942
    %v1277 = vpack.c.b16 %v947, %v945
    %v1278 = vpack.c.b16 %v948, %v946
    %v1279 = vpack.c.b16 %v951, %v949
    %v1280 = vpack.c.b16 %v952, %v950
    %v1281 = vpack.c.b16 %v955, %v953
    %v1282 = vpack.c.b16 %v956, %v954
    %v1283 = vpack.c.b16 %v959, %v957
    %v1284 = vpack.c.b16 %v960, %v958
    %v1285 = vpack.c.b16 %v963, %v961
    %v1286 = vpack.c.b16 %v964, %v962
    %v1287 = vpack.c.b16 %v967, %v965
    %v1288 = vpack.c.b16 %v968, %v966
    %v1289 = vpack.c.b16 %v971, %v969
    %v1290 = vpack.c.b16 %v972, %v970
    %v1291 = vpack.c.b16 %v975, %v973
    %v1292 = vpack.c.b16 %v976, %v974
    %v1293 = vpack.c.b16 %v979, %v977
    %v1294 = vpack.c.b16 %v980, %v978
    %v1295 = vpack.c.b16 %v983, %v981
    %v1296 = vpack.c.b16 %v984, %v982
    %v1297 = vpack.c.b16 %v987, %v985
    %v1298 = vpack.c.b16 %v988, %v986
    %v1299 = vpack.c.b16 %v991, %v989
    %v1300 = vpack.c.b16 %v992, %v990
    %v1301 = vpack.c.b16 %v995, %v993
    %v1302 = vpack.c.b16 %v996, %v994
    %v1303 = vpack.c.b16 %v999, %v997
    %v1304 = vpack.c.b16 %v1000, %v998
    %v1305 = vpack.c.b16 %v1003, %v1001
    %v1306 = vpack.c.b16 %v1004, %v1002
    %v1307 = vpack.c.b16 %v1007, %v1005
    %v1308 = vpack.c.b16 %v1008, %v1006
    %v1309 = vpack.c.b16 %v1011, %v1009
    %v1310 = vpack.c.b16 %v1012, %v1010
    %v1311 = vpack.c.b16 %v1015, %v1013
    %v1312 = vpack.c.b16 %v1016, %v1014
    %v1313 = vpack.c.b16 %v1019, %v1017
    %v1314 = vpack.c.b16 %v1020, %v1018
    %v1315 = vpack.c.b16 %v1023, %v1021
    %v1316 = vpack.c.b16 %v1024, %v1022
    %v1317 = vpack.c.b16 %v1027, %v1025
    %v1318 = vpack.c.b16 %v1028, %v1026
    %v1319 = vpack.c.b16 %v1031, %v1029
    %v1320 = vpack.c.b16 %v1032, %v1030
    %v1321 = vpack.c.b16 %v1035, %v1033
    %v1322 = vpack.c.b16 %v1036, %v1034
    %v1323 = vpack.c.b16 %v1039, %v1037
    %v1324 = vpack.c.b16 %v1040, %v1038
    %v1325 = vpack.c.b16 %v1043, %v1041
    %v1326 = vpack.c.b16 %v1044, %v1042
    %v1327 = vpack.c.b16 %v1047, %v1045
    %v1328 = vpack.c.b16 %v1048, %v1046
    %v1329 = vpack.c.b16 %v1051, %v1049
    %v1330 = vpack.c.b16 %v1052, %v1050
    %v1331 = vpack.c.b16 %v1055, %v1053
    %v1332 = vpack.c.b16 %v1056, %v1054
    %v1333 = vpack.c.b16 %v1059, %v1057
    %v1334 = vpack.c.b16 %v1060, %v1058
    %v1335 = vpack.c.b16 %v1063, %v1061
    %v1336 = vpack.c.b16 %v1064, %v1062
    %v1337 = vpack.c.b16 %v1067, %v1065
    %v1338 = vpack.c.b16 %v1068, %v1066
    %v1339 = vpack.c.b16 %v1071, %v1069
    %v1340 = vpack.c.b16 %v1072, %v1070
    %v1341 = vpack.c.b16 %v1075, %v1073
    %v1342 = vpack.c.b16 %v1076, %v1074
    %v1343 = vpack.c.b16 %v1079, %v1077
    %v1344 = vpack.c.b16 %v1080, %v1078
    %v1345 = vpack.c.b16 %v1083, %v1081
    %v1346 = vpack.c.b16 %v1084, %v1082
    %v1347 = vpack.c.b16 %v1087, %v1085
    %v1348 = vpack.c.b16 %v1088, %v1086
    %v1349 = vpack.c.b16 %v1091, %v1089
    %v1350 = vpack.c.b16 %v1092, %v1090
    %v1351 = vpack.c.b16 %v1095, %v1093
    %v1352 = vpack.c.b16 %v1096, %v1094
    %1609 = vmatprep.subr.bf16.mxu0 %v1098
    %1610 = vmatpush1.bf16.msra.mxu0 %v1097
    %1611 = vmatprep.subr.bf16.mxu0 %v1100
    %1612 = vmatpush1.bf16.msra.mxu0 %v1099
    %1613 = vmatprep.subr.bf16.mxu0 %v1102
    %1614 = vmatpush1.bf16.msra.mxu0 %v1101
    %1615 = vmatprep.subr.bf16.mxu0 %v1104
    %1616 = vmatpush1.bf16.msra.mxu0 %v1103
    %1617 = vmatprep.subr.bf16.mxu0 %v1106
    %1618 = vmatpush1.bf16.msra.mxu0 %v1105
    %1619 = vmatprep.subr.bf16.mxu0 %v1108
    %1620 = vmatpush1.bf16.msra.mxu0 %v1107
    %1621 = vmatprep.subr.bf16.mxu0 %v1110
    %1622 = vmatpush1.bf16.msra.mxu0 %v1109
    %1623 = vmatprep.subr.bf16.mxu0 %v1112
    %1624 = vmatpush1.bf16.msra.mxu0 %v1111
    %1625 = vmatprep.subr.bf16.mxu0 %v1114
    %1626 = vmatpush1.bf16.msra.mxu0 %v1113
    %1627 = vmatprep.subr.bf16.mxu0 %v1116
    %1628 = vmatpush1.bf16.msra.mxu0 %v1115
    %1629 = vmatprep.subr.bf16.mxu0 %v1118
    %1630 = vmatpush1.bf16.msra.mxu0 %v1117
    %1631 = vmatprep.subr.bf16.mxu0 %v1120
    %1632 = vmatpush1.bf16.msra.mxu0 %v1119
    %1633 = vmatprep.subr.bf16.mxu0 %v1122
    %1634 = vmatpush1.bf16.msra.mxu0 %v1121
    %1635 = vmatprep.subr.bf16.mxu0 %v1124
    %1636 = vmatpush1.bf16.msra.mxu0 %v1123
    %1637 = vmatprep.subr.bf16.mxu0 %v1126
    %1638 = vmatpush1.bf16.msra.mxu0 %v1125
    %1639 = vmatprep.subr.bf16.mxu0 %v1128
    %1640 = vmatpush1.bf16.msra.mxu0 %v1127
    %1641 = vmatprep.mubr.bf16.mxu0 %v58
    %1642 = vmatmul.mubr.bf16.gmra.mrb[0].mxu0 %v57
    %v1643 = vpop.f32.mrb[0].mxu0
    %v1644 = vadd.f32 0.0, %v1643
    %v1645 = vpop.f32.mrb[0].mxu0
    %v1646 = vadd.f32 0.0, %v1645
    %v1647 = vpop.f32.mrb[0].mxu0
    %v1648 = vpop.f32.mrb[0].mxu0
    %1649 = vdwg.mxu0
    %1650 = vmatprep.subr.bf16.mxu0 %v1130
    %1651 = vmatpush1.bf16.msra.mxu0 %v1129
    %1652 = vmatprep.subr.bf16.mxu0 %v1132
    %1653 = vmatpush1.bf16.msra.mxu0 %v1131
    %1654 = vmatprep.subr.bf16.mxu0 %v1134
    %1655 = vmatpush1.bf16.msra.mxu0 %v1133
    %1656 = vmatprep.subr.bf16.mxu0 %v1136
    %1657 = vmatpush1.bf16.msra.mxu0 %v1135
    %1658 = vmatprep.subr.bf16.mxu0 %v1138
    %1659 = vmatpush1.bf16.msra.mxu0 %v1137
    %1660 = vmatprep.subr.bf16.mxu0 %v1140
    %1661 = vmatpush1.bf16.msra.mxu0 %v1139
    %1662 = vmatprep.subr.bf16.mxu0 %v1142
    %1663 = vmatpush1.bf16.msra.mxu0 %v1141
    %1664 = vmatprep.subr.bf16.mxu0 %v1144
    %1665 = vmatpush1.bf16.msra.mxu0 %v1143
    %1666 = vmatprep.subr.bf16.mxu0 %v1146
    %1667 = vmatpush1.bf16.msra.mxu0 %v1145
    %1668 = vmatprep.subr.bf16.mxu0 %v1148
    %1669 = vmatpush1.bf16.msra.mxu0 %v1147
    %1670 = vmatprep.subr.bf16.mxu0 %v1150
    %1671 = vmatpush1.bf16.msra.mxu0 %v1149
    %1672 = vmatprep.subr.bf16.mxu0 %v1152
    %1673 = vmatpush1.bf16.msra.mxu0 %v1151
    %1674 = vmatprep.subr.bf16.mxu0 %v1154
    %1675 = vmatpush1.bf16.msra.mxu0 %v1153
    %1676 = vmatprep.subr.bf16.mxu0 %v1156
    %1677 = vmatpush1.bf16.msra.mxu0 %v1155
    %1678 = vmatprep.subr.bf16.mxu0 %v1158
    %1679 = vmatpush1.bf16.msra.mxu0 %v1157
    %1680 = vmatprep.subr.bf16.mxu0 %v1160
    %1681 = vmatpush1.bf16.msra.mxu0 %v1159
    %1682 = vmatprep.mubr.bf16.mxu0 %v60
    %1683 = vmatmul.mubr.bf16.gmra.mrb[0].mxu0 %v59
    %v1684 = vpop.f32.mrb[0].mxu0
    %v1685 = vadd.f32 %v1644, %v1684
    %v1686 = vpop.f32.mrb[0].mxu0
    %v1687 = vadd.f32 %v1646, %v1686
    %v1688 = vpop.f32.mrb[0].mxu0
    %v1689 = vpop.f32.mrb[0].mxu0
    %1690 = vdwg.mxu0
    %1691 = vmatprep.subr.bf16.mxu0 %v1162
    %1692 = vmatpush1.bf16.msra.mxu0 %v1161
    %1693 = vmatprep.subr.bf16.mxu0 %v1164
    %1694 = vmatpush1.bf16.msra.mxu0 %v1163
    %1695 = vmatprep.subr.bf16.mxu0 %v1166
    %1696 = vmatpush1.bf16.msra.mxu0 %v1165
    %1697 = vmatprep.subr.bf16.mxu0 %v1168
    %1698 = vmatpush1.bf16.msra.mxu0 %v1167
    %1699 = vmatprep.subr.bf16.mxu0 %v1170
    %1700 = vmatpush1.bf16.msra.mxu0 %v1169
    %1701 = vmatprep.subr.bf16.mxu0 %v1172
    %1702 = vmatpush1.bf16.msra.mxu0 %v1171
    %1703 = vmatprep.subr.bf16.mxu0 %v1174
    %1704 = vmatpush1.bf16.msra.mxu0 %v1173
    %1705 = vmatprep.subr.bf16.mxu0 %v1176
    %1706 = vmatpush1.bf16.msra.mxu0 %v1175
    %1707 = vmatprep.subr.bf16.mxu0 %v1178
    %1708 = vmatpush1.bf16.msra.mxu0 %v1177
    %1709 = vmatprep.subr.bf16.mxu0 %v1180
    %1710 = vmatpush1.bf16.msra.mxu0 %v1179
    %1711 = vmatprep.subr.bf16.mxu0 %v1182
    %1712 = vmatpush1.bf16.msra.mxu0 %v1181
    %1713 = vmatprep.subr.bf16.mxu0 %v1184
    %1714 = vmatpush1.bf16.msra.mxu0 %v1183
    %1715 = vmatprep.subr.bf16.mxu0 %v1186
    %1716 = vmatpush1.bf16.msra.mxu0 %v1185
    %1717 = vmatprep.subr.bf16.mxu0 %v1188
    %1718 = vmatpush1.bf16.msra.mxu0 %v1187
    %1719 = vmatprep.subr.bf16.mxu0 %v1190
    %1720 = vmatpush1.bf16.msra.mxu0 %v1189
    %1721 = vmatprep.subr.bf16.mxu0 %v1192
    %1722 = vmatpush1.bf16.msra.mxu0 %v1191
    %1723 = vmatprep.mubr.bf16.mxu0 %v62
    %1724 = vmatmul.mubr.bf16.gmra.mrb[0].mxu0 %v61
    %v1725 = vpop.f32.mrb[0].mxu0
    %v1726 = vadd.f32 %v1685, %v1725
    %v1727 = vpop.f32.mrb[0].mxu0
    %v1728 = vadd.f32 %v1687, %v1727
    %v1729 = vpop.f32.mrb[0].mxu0
    %v1730 = vpop.f32.mrb[0].mxu0
    %1731 = vdwg.mxu0
    %1732 = vmatprep.subr.bf16.mxu0 %v1194
    %1733 = vmatpush1.bf16.msra.mxu0 %v1193
    %1734 = vmatprep.subr.bf16.mxu0 %v1196
    %1735 = vmatpush1.bf16.msra.mxu0 %v1195
    %1736 = vmatprep.subr.bf16.mxu0 %v1198
    %1737 = vmatpush1.bf16.msra.mxu0 %v1197
    %1738 = vmatprep.subr.bf16.mxu0 %v1200
    %1739 = vmatpush1.bf16.msra.mxu0 %v1199
    %1740 = vmatprep.subr.bf16.mxu0 %v1202
    %1741 = vmatpush1.bf16.msra.mxu0 %v1201
    %1742 = vmatprep.subr.bf16.mxu0 %v1204
    %1743 = vmatpush1.bf16.msra.mxu0 %v1203
    %1744 = vmatprep.subr.bf16.mxu0 %v1206
    %1745 = vmatpush1.bf16.msra.mxu0 %v1205
    %1746 = vmatprep.subr.bf16.mxu0 %v1208
    %1747 = vmatpush1.bf16.msra.mxu0 %v1207
    %1748 = vmatprep.subr.bf16.mxu0 %v1210
    %1749 = vmatpush1.bf16.msra.mxu0 %v1209
    %1750 = vmatprep.subr.bf16.mxu0 %v1212
    %1751 = vmatpush1.bf16.msra.mxu0 %v1211
    %1752 = vmatprep.subr.bf16.mxu0 %v1214
    %1753 = vmatpush1.bf16.msra.mxu0 %v1213
    %1754 = vmatprep.subr.bf16.mxu0 %v1216
    %1755 = vmatpush1.bf16.msra.mxu0 %v1215
    %1756 = vmatprep.subr.bf16.mxu0 %v1218
    %1757 = vmatpush1.bf16.msra.mxu0 %v1217
    %1758 = vmatprep.subr.bf16.mxu0 %v1220
    %1759 = vmatpush1.bf16.msra.mxu0 %v1219
    %1760 = vmatprep.subr.bf16.mxu0 %v1222
    %1761 = vmatpush1.bf16.msra.mxu0 %v1221
    %1762 = vmatprep.subr.bf16.mxu0 %v1224
    %1763 = vmatpush1.bf16.msra.mxu0 %v1223
    %1764 = vmatprep.mubr.bf16.mxu0 %v64
    %1765 = vmatmul.mubr.bf16.gmra.mrb[0].mxu0 %v63
    %v1766 = vpop.f32.mrb[0].mxu0
    %v1767 = vadd.f32 %v1726, %v1766
    %v1768 = vpop.f32.mrb[0].mxu0
    %v1769 = vadd.f32 %v1728, %v1768
    %v1770 = vpop.f32.mrb[0].mxu0
    %v1771 = vpop.f32.mrb[0].mxu0
    %1772 = vdwg.mxu0
    %1773 = vmatprep.subr.bf16.mxu0 %v1226
    %1774 = vmatpush1.bf16.msra.mxu0 %v1225
    %1775 = vmatprep.subr.bf16.mxu0 %v1228
    %1776 = vmatpush1.bf16.msra.mxu0 %v1227
    %1777 = vmatprep.subr.bf16.mxu0 %v1230
    %1778 = vmatpush1.bf16.msra.mxu0 %v1229
    %1779 = vmatprep.subr.bf16.mxu0 %v1232
    %1780 = vmatpush1.bf16.msra.mxu0 %v1231
    %1781 = vmatprep.subr.bf16.mxu0 %v1234
    %1782 = vmatpush1.bf16.msra.mxu0 %v1233
    %1783 = vmatprep.subr.bf16.mxu0 %v1236
    %1784 = vmatpush1.bf16.msra.mxu0 %v1235
    %1785 = vmatprep.subr.bf16.mxu0 %v1238
    %1786 = vmatpush1.bf16.msra.mxu0 %v1237
    %1787 = vmatprep.subr.bf16.mxu0 %v1240
    %1788 = vmatpush1.bf16.msra.mxu0 %v1239
    %1789 = vmatprep.subr.bf16.mxu0 %v1242
    %1790 = vmatpush1.bf16.msra.mxu0 %v1241
    %1791 = vmatprep.subr.bf16.mxu0 %v1244
    %1792 = vmatpush1.bf16.msra.mxu0 %v1243
    %1793 = vmatprep.subr.bf16.mxu0 %v1246
    %1794 = vmatpush1.bf16.msra.mxu0 %v1245
    %1795 = vmatprep.subr.bf16.mxu0 %v1248
    %1796 = vmatpush1.bf16.msra.mxu0 %v1247
    %1797 = vmatprep.subr.bf16.mxu0 %v1250
    %1798 = vmatpush1.bf16.msra.mxu0 %v1249
    %1799 = vmatprep.subr.bf16.mxu0 %v1252
    %1800 = vmatpush1.bf16.msra.mxu0 %v1251
    %1801 = vmatprep.subr.bf16.mxu0 %v1254
    %1802 = vmatpush1.bf16.msra.mxu0 %v1253
    %1803 = vmatprep.subr.bf16.mxu0 %v1256
    %1804 = vmatpush1.bf16.msra.mxu0 %v1255
    %1805 = vmatprep.mubr.bf16.mxu0 %v66
    %1806 = vmatmul.mubr.bf16.gmra.mrb[0].mxu0 %v65
    %v1807 = vpop.f32.mrb[0].mxu0
    %v1808 = vadd.f32 %v1767, %v1807
    %v1809 = vpop.f32.mrb[0].mxu0
    %v1810 = vadd.f32 %v1769, %v1809
    %v1811 = vpop.f32.mrb[0].mxu0
    %v1812 = vpop.f32.mrb[0].mxu0
    %1813 = vdwg.mxu0
    %1814 = vmatprep.subr.bf16.mxu0 %v1258
    %1815 = vmatpush1.bf16.msra.mxu0 %v1257
    %1816 = vmatprep.subr.bf16.mxu0 %v1260
    %1817 = vmatpush1.bf16.msra.mxu0 %v1259
    %1818 = vmatprep.subr.bf16.mxu0 %v1262
    %1819 = vmatpush1.bf16.msra.mxu0 %v1261
    %1820 = vmatprep.subr.bf16.mxu0 %v1264
    %1821 = vmatpush1.bf16.msra.mxu0 %v1263
    %1822 = vmatprep.subr.bf16.mxu0 %v1266
    %1823 = vmatpush1.bf16.msra.mxu0 %v1265
    %1824 = vmatprep.subr.bf16.mxu0 %v1268
    %1825 = vmatpush1.bf16.msra.mxu0 %v1267
    %1826 = vmatprep.subr.bf16.mxu0 %v1270
    %1827 = vmatpush1.bf16.msra.mxu0 %v1269
    %1828 = vmatprep.subr.bf16.mxu0 %v1272
    %1829 = vmatpush1.bf16.msra.mxu0 %v1271
    %1830 = vmatprep.subr.bf16.mxu0 %v1274
    %1831 = vmatpush1.bf16.msra.mxu0 %v1273
    %1832 = vmatprep.subr.bf16.mxu0 %v1276
    %1833 = vmatpush1.bf16.msra.mxu0 %v1275
    %1834 = vmatprep.subr.bf16.mxu0 %v1278
    %1835 = vmatpush1.bf16.msra.mxu0 %v1277
    %1836 = vmatprep.subr.bf16.mxu0 %v1280
    %1837 = vmatpush1.bf16.msra.mxu0 %v1279
    %1838 = vmatprep.subr.bf16.mxu0 %v1282
    %1839 = vmatpush1.bf16.msra.mxu0 %v1281
    %1840 = vmatprep.subr.bf16.mxu0 %v1284
    %1841 = vmatpush1.bf16.msra.mxu0 %v1283
    %1842 = vmatprep.subr.bf16.mxu0 %v1286
    %1843 = vmatpush1.bf16.msra.mxu0 %v1285
    %1844 = vmatprep.subr.bf16.mxu0 %v1288
    %1845 = vmatpush1.bf16.msra.mxu0 %v1287
    %1846 = vmatprep.mubr.bf16.mxu0 %v68
    %1847 = vmatmul.mubr.bf16.gmra.mrb[0].mxu0 %v67
    %v1848 = vpop.f32.mrb[0].mxu0
    %v1849 = vadd.f32 %v1808, %v1848
    %v1850 = vpop.f32.mrb[0].mxu0
    %v1851 = vadd.f32 %v1810, %v1850
    %v1852 = vpop.f32.mrb[0].mxu0
    %v1853 = vpop.f32.mrb[0].mxu0
    %1854 = vdwg.mxu0
    %1855 = vmatprep.subr.bf16.mxu0 %v1290
    %1856 = vmatpush1.bf16.msra.mxu0 %v1289
    %1857 = vmatprep.subr.bf16.mxu0 %v1292
    %1858 = vmatpush1.bf16.msra.mxu0 %v1291
    %1859 = vmatprep.subr.bf16.mxu0 %v1294
    %1860 = vmatpush1.bf16.msra.mxu0 %v1293
    %1861 = vmatprep.subr.bf16.mxu0 %v1296
    %1862 = vmatpush1.bf16.msra.mxu0 %v1295
    %1863 = vmatprep.subr.bf16.mxu0 %v1298
    %1864 = vmatpush1.bf16.msra.mxu0 %v1297
    %1865 = vmatprep.subr.bf16.mxu0 %v1300
    %1866 = vmatpush1.bf16.msra.mxu0 %v1299
    %1867 = vmatprep.subr.bf16.mxu0 %v1302
    %1868 = vmatpush1.bf16.msra.mxu0 %v1301
    %1869 = vmatprep.subr.bf16.mxu0 %v1304
    %1870 = vmatpush1.bf16.msra.mxu0 %v1303
    %1871 = vmatprep.subr.bf16.mxu0 %v1306
    %1872 = vmatpush1.bf16.msra.mxu0 %v1305
    %1873 = vmatprep.subr.bf16.mxu0 %v1308
    %1874 = vmatpush1.bf16.msra.mxu0 %v1307
    %1875 = vmatprep.subr.bf16.mxu0 %v1310
    %1876 = vmatpush1.bf16.msra.mxu0 %v1309
    %1877 = vmatprep.subr.bf16.mxu0 %v1312
    %1878 = vmatpush1.bf16.msra.mxu0 %v1311
    %1879 = vmatprep.subr.bf16.mxu0 %v1314
    %1880 = vmatpush1.bf16.msra.mxu0 %v1313
    %1881 = vmatprep.subr.bf16.mxu0 %v1316
    %1882 = vmatpush1.bf16.msra.mxu0 %v1315
    %1883 = vmatprep.subr.bf16.mxu0 %v1318
    %1884 = vmatpush1.bf16.msra.mxu0 %v1317
    %1885 = vmatprep.subr.bf16.mxu0 %v1320
    %1886 = vmatpush1.bf16.msra.mxu0 %v1319
    %1887 = vmatprep.mubr.bf16.mxu0 %v70
    %1888 = vmatmul.mubr.bf16.gmra.mrb[0].mxu0 %v69
    %v1889 = vpop.f32.mrb[0].mxu0
    %v1890 = vadd.f32 %v1849, %v1889
    %v1891 = vpop.f32.mrb[0].mxu0
    %v1892 = vadd.f32 %v1851, %v1891
    %v1893 = vpop.f32.mrb[0].mxu0
    %v1894 = vpop.f32.mrb[0].mxu0
    %1895 = vdwg.mxu0
    %1896 = vmatprep.subr.bf16.mxu0 %v1322
    %1897 = vmatpush1.bf16.msra.mxu0 %v1321
    %1898 = vmatprep.subr.bf16.mxu0 %v1324
    %1899 = vmatpush1.bf16.msra.mxu0 %v1323
    %1900 = vmatprep.subr.bf16.mxu0 %v1326
    %1901 = vmatpush1.bf16.msra.mxu0 %v1325
    %1902 = vmatprep.subr.bf16.mxu0 %v1328
    %1903 = vmatpush1.bf16.msra.mxu0 %v1327
    %1904 = vmatprep.subr.bf16.mxu0 %v1330
    %1905 = vmatpush1.bf16.msra.mxu0 %v1329
    %1906 = vmatprep.subr.bf16.mxu0 %v1332
    %1907 = vmatpush1.bf16.msra.mxu0 %v1331
    %1908 = vmatprep.subr.bf16.mxu0 %v1334
    %1909 = vmatpush1.bf16.msra.mxu0 %v1333
    %1910 = vmatprep.subr.bf16.mxu0 %v1336
    %1911 = vmatpush1.bf16.msra.mxu0 %v1335
    %1912 = vmatprep.subr.bf16.mxu0 %v1338
    %1913 = vmatpush1.bf16.msra.mxu0 %v1337
    %1914 = vmatprep.subr.bf16.mxu0 %v1340
    %1915 = vmatpush1.bf16.msra.mxu0 %v1339
    %1916 = vmatprep.subr.bf16.mxu0 %v1342
    %1917 = vmatpush1.bf16.msra.mxu0 %v1341
    %1918 = vmatprep.subr.bf16.mxu0 %v1344
    %1919 = vmatpush1.bf16.msra.mxu0 %v1343
    %1920 = vmatprep.subr.bf16.mxu0 %v1346
    %1921 = vmatpush1.bf16.msra.mxu0 %v1345
    %1922 = vmatprep.subr.bf16.mxu0 %v1348
    %1923 = vmatpush1.bf16.msra.mxu0 %v1347
    %1924 = vmatprep.subr.bf16.mxu0 %v1350
    %1925 = vmatpush1.bf16.msra.mxu0 %v1349
    %1926 = vmatprep.subr.bf16.mxu0 %v1352
    %1927 = vmatpush1.bf16.msra.mxu0 %v1351
    %1928 = vmatprep.mubr.bf16.mxu0 %v72
    %1929 = vmatmul.mubr.bf16.gmra.mrb[0].mxu0 %v71
    %v1930 = vpop.f32.mrb[0].mxu0
    %v1931 = vadd.f32 %v1890, %v1930
    %v1932 = vpop.f32.mrb[0].mxu0
    %v1933 = vadd.f32 %v1892, %v1932
    %v1934 = vpop.f32.mrb[0].mxu0
    %v1935 = vpop.f32.mrb[0].mxu0
    %1936 = vdwg.mxu0
    %v1937 = vrot.slane %v1931, 4
    %v1938 = vadd.f32 %v1931, %v1937
    %v1939 = vrot.slane %v1938, 2
    %v1940 = vadd.f32 %v1938, %v1939
    %v1941 = vrot.slane %v1940, 1
    %v1942 = vadd.f32 %v1940, %v1941
    %v1943 = vrot.slane %v1933, 4
    %v1944 = vadd.f32 %v1933, %v1943
    %v1945 = vrot.slane %v1944, 2
    %v1946 = vadd.f32 %v1944, %v1945
    %v1947 = vrot.slane %v1946, 1
    %v1948 = vadd.f32 %v1946, %v1947
    %v1949 = vrcp.pop 8.0
    %v1950 = vmul.f32 %v1942, %v1949
    %v1951 = vmul.f32 %v1948, %v1949
    %v1952 = vsub.f32 %v1931, %v1950
    %v1953 = vsub.f32 %v1933, %v1951
    %v1954 = vmul.f32 %v1952, %v1952
    %v1955 = vmul.f32 %v1953, %v1953
    %v1956 = vrot.slane %v1954, 4
    %v1957 = vadd.f32 %v1954, %v1956
    %v1958 = vrot.slane %v1957, 2
    %v1959 = vadd.f32 %v1957, %v1958
    %v1960 = vrot.slane %v1959, 1
    %v1961 = vadd.f32 %v1959, %v1960
    %v1962 = vrot.slane %v1955, 4
    %v1963 = vadd.f32 %v1955, %v1962
    %v1964 = vrot.slane %v1963, 2
    %v1965 = vadd.f32 %v1963, %v1964
    %v1966 = vrot.slane %v1965, 1
    %v1967 = vadd.f32 %v1965, %v1966
    %v1968 = vmul.f32 %v1961, %v1949
    %v1969 = vmul.f32 %v1967, %v1949
    %v1970 = vadd.f32 %v1968, 1e-05
    %v1971 = vadd.f32 %v1969, 1e-05
    %v1972 = vrsqrt.pop %v1970
    %v1973 = vrsqrt.pop %v1971
    %v1974 = vld [vmem:[%s2] ss:$2 sm:$0x3]
    %s1975 = scalar_lea.vmem %s2, 1
    %v1976 = vld [vmem:[%s1975] ss:$2 sm:$0x3]
    %v1978 = vlaneseq
    %v1979 = vshrl.u32 %v1978, 7
    %v1980 = vsub.s32 0, %v1979
    %v1981 = vrot.slane %v1974, %v1980
    %v1982 = vlaneseq
    %v1983 = vshrl.u32 %v1982, 7
    %v1984 = vsub.s32 1, %v1983
    %v1985 = vrot.slane %v1974, %v1984
    %v1988 = vmul.f32 %v1972, %v1981
    %v1989 = vmul.f32 %v1973, %v1985
    %v1990 = vmul.f32 %v1950, %v1988
    %v1991 = vmul.f32 %v1951, %v1989
    %v1994 = vcombine.low %v1990, %v1991
    %v1996 = vunpack.c.l.s4 1966171168
    %v1997 = vunpack.c.0.s8 %v1996
    %v1998 = vlaneseq
    %v1999 = vshrl.u32 %v1998, 7
    %v2000 = vsub.s32 %v1997, %v1999
    %v2001 = vrot.slane %v1994, %v2000
    %v2003 = vunpack.c.l.s4 1966171168
    %v2004 = vunpack.c.0.s8 %v2003
    %v2005 = vlaneseq
    %v2006 = vshrl.u32 %v2005, 7
    %v2007 = vsub.s32 %v2004, %v2006
    %v2008 = vrot.slane %v2001, %v2007
    %v2010 = vsub.f32 %v1976, %v2008
    %v2011 = vlaneseq
    %v2012 = vshrl.u32 %v2011, 7
    %v2013 = vsub.s32 0, %v2012
    %v2014 = vrot.slane %v1988, %v2013
    %v2015 = vlaneseq
    %v2016 = vshrl.u32 %v2015, 7
    %v2017 = vsub.s32 0, %v2016
    %v2018 = vrot.slane %v1989, %v2017
    %v2019 = vmul.f32 %v1931, %v2014
    %v2020 = vmul.f32 %v1933, %v2018
    %v2022 = vlaneseq
    %v2023 = vshrl.u32 %v2022, 7
    %v2024 = vsub.s32 0, %v2023
    %v2025 = vrot.slane %v2010, %v2024
    %v2026 = vlaneseq
    %v2027 = vshrl.u32 %v2026, 7
    %v2028 = vsub.s32 1, %v2027
    %v2029 = vrot.slane %v2010, %v2028
    %v2032 = vadd.f32 %v2019, %v2025
    %v2033 = vadd.f32 %v2020, %v2029
    %2034 = vst [vmem:[#allocation7] sm:$0xff] %v2032
    %2035 = vst [vmem:[#allocation7 + $0x8] sm:$0xff] %v2033
    // Predicated region
    $region22: #{tpu_custom_call.1} parent=1 // pred_check
      _
    $region23: #{tpu_custom_call.1} parent=1 // pred_check_branch
      %2037 = sbr.rel (0) target = $region25
    $region24: #{tpu_custom_call.1} parent=1 // pred_region
      %s2039 = ssub.s32 256, 256
      %2040 = vsyncadd [#allocation4], %s2039
      %s2042 = sshll.u32 [#allocation7], 4
      %s2043 = int_to_ptr.vmem [resolvable:$true] %s2042
      %2045 = dma.vmem_to_hbm [thread:$0]  %s2043, 256, %s3, [#allocation4]
    $region25: #{tpu_custom_call.1} parent=1 // pred_fallthru
      _
    // Predicated region
    $region26: #{tpu_custom_call.1} parent=1 // pred_check
      _
    $region27: #{tpu_custom_call.1} parent=1 // pred_check_branch
      %2047 = sbr.rel (0) target = $region29
    $region28: #{tpu_custom_call.1} parent=1 // pred_region
      %2048 = dma.done [#allocation4], 256
    $region29: #{tpu_custom_call.1} parent=1 // pred_fallthru
      _
    %2049 = vsyncpa [#allocation3], 1
    %2050 = vsyncpa [#allocation6], 1
    %2051 = vsyncpa [#allocation4], 1

</llo_original>
